<compile_context>
chip_gen: v7x
topology: tpu7x:2x2x1
jax: 0.10.0
libtpu: 0.0.40
codegen_flags: <defaults>
</compile_context>

<pallas_src>
import jax
import jax.numpy as jnp
from jax.experimental import pallas as pl
from jax.experimental.pallas import tpu as pltpu

IN_DIM = 28 * 28      # 784
H1, H1_P = 300, 384   # padded to lane multiples of 128
H2, H2_P = 100, 128
OUT_DIM, OUT_P = 10, 128

_PADDED_MACS = IN_DIM * H1_P + H1_P * H2_P + H2_P * OUT_P   # per padded row
_WEIGHT_BYTES = 2 * _PADDED_MACS                            # bf16 weights


def _round_up(x, m):
    return ((x + m - 1) // m) * m


def fc_kernel(x_ref, w1_ref, w2_ref, w3_ref, o_ref):
    # x_ref : (TILE_M, 784) f32  (cast to bf16 here, on the VPU)
    # w1_ref: (784, 384) bf16   w2_ref: (384, 128) bf16   w3_ref: (128, 128) bf16
    # o_ref : (TILE_M, 128) bf16  (only first 10 cols meaningful)
    x = x_ref[...].astype(jnp.bfloat16)
    h1 = jnp.dot(x, w1_ref[...], preferred_element_type=jnp.float32)
    h1 = jnp.maximum(h1, 0.0).astype(jnp.bfloat16)           # ReLU (VPU)
    h2 = jnp.dot(h1, w2_ref[...], preferred_element_type=jnp.float32)
    h2 = jnp.maximum(h2, 0.0).astype(jnp.bfloat16)           # ReLU (VPU)
    o = jnp.dot(h2, w3_ref[...], preferred_element_type=jnp.float32)
    o_ref[...] = o.astype(jnp.bfloat16)


def prepare_params(w1, w2, w3):
    """One-time weight prep (outside the hot path).

    w1, w2, w3: PyTorch conv1x1 weights, squeezed to (out, in).
    Returns bf16 (in, out) matrices zero-padded to lane multiples of 128.
    """
    def pad_to(a, rows, cols):
        return jnp.pad(a, ((0, rows - a.shape[0]), (0, cols - a.shape[1])))

    w1p = pad_to(w1.T, IN_DIM, H1_P).astype(jnp.bfloat16)    # (784, 384)
    w2p = pad_to(w2.T, H1_P, H2_P).astype(jnp.bfloat16)      # (384, 128)
    w3p = pad_to(w3.T, H2_P, OUT_P).astype(jnp.bfloat16)     # (128, 128)
    return w1p, w2p, w3p


def fc_forward(x_nchw, params, *, tile_m=512):
    """x_nchw: (B, 1, 28, 28) float32 (NCHW, like PyTorch).
    params: output of prepare_params.  Returns (B, 10) float32."""
    w1p, w2p, w3p = params
    B = x_nchw.shape[0]
    x2d = x_nchw.reshape(B, IN_DIM)          # stays f32; cast happens in-kernel

    # Batch tiling: multiples of 16 rows (bf16 sublane packing).
    tile_m = min(tile_m, _round_up(B, 16))
    if B > tile_m:
        # Ensure >= 2 grid steps so both v7x TensorCores get work.
        tile_m = min(tile_m, _round_up((B + 1) // 2, 16))
    b_pad = _round_up(B, tile_m)
    if b_pad != B:
        x2d = jnp.pad(x2d, ((0, b_pad - B), (0, 0)))
    grid = (b_pad // tile_m,)

    cost = pl.CostEstimate(
        flops=2 * b_pad * _PADDED_MACS,
        transcendentals=0,
        bytes_accessed=b_pad * IN_DIM * 4 + b_pad * OUT_P * 2 + _WEIGHT_BYTES,
    )

    out = pl.pallas_call(
        fc_kernel,
        out_shape=jax.ShapeDtypeStruct((b_pad, OUT_P), jnp.bfloat16),
        grid=grid,
        in_specs=[
            # x: tiled on rows, f32, double-buffered (streams per grid step)
            pl.BlockSpec((tile_m, IN_DIM), lambda i: (i, 0)),
            # weights: constant index_map -> VMEM-resident; single-buffered
            pl.BlockSpec((IN_DIM, H1_P), lambda i: (0, 0),
                         pipeline_mode=pl.Buffered(1)),
            pl.BlockSpec((H1_P, H2_P), lambda i: (0, 0),
                         pipeline_mode=pl.Buffered(1)),
            pl.BlockSpec((H2_P, OUT_P), lambda i: (0, 0),
                         pipeline_mode=pl.Buffered(1)),
        ],
        out_specs=pl.BlockSpec((tile_m, OUT_P), lambda i: (i, 0)),
        compiler_params=pltpu.CompilerParams(
            dimension_semantics=("parallel",),
        ),
        cost_estimate=cost,
    )(x2d, w1p, w2p, w3p)

    # Tiny slice/cast; lane-dense padded block was the kernel's HBM write.
    return out[:B, :OUT_DIM].astype(jnp.float32)


def _ref_forward(x_nchw, w1, w2, w3):
    B = x_nchw.shape[0]
    h = x_nchw.reshape(B, IN_DIM)
    h = jnp.maximum(h @ w1.T, 0.0)
    h = jnp.maximum(h @ w2.T, 0.0)
    return h @ w3.T


if __name__ == "__main__":
    key = jax.random.PRNGKey(0)
    kx, k1, k2, k3 = jax.random.split(key, 4)

    B = 8
    x = jax.random.normal(kx, (B, 1, 28, 28), dtype=jnp.float32)

    # PyTorch conv1x1 weight shape is (out, in, 1, 1); keep the squeezed
    # (out, in) form with a deterministic Kaiming-ish init.
    w1 = jax.random.normal(k1, (H1, IN_DIM), dtype=jnp.float32) * (2.0 / IN_DIM) ** 0.5
    w2 = jax.random.normal(k2, (H2, H1), dtype=jnp.float32) * (2.0 / H1) ** 0.5
    w3 = jax.random.normal(k3, (OUT_DIM, H2), dtype=jnp.float32) * (2.0 / H2) ** 0.5

    params = prepare_params(w1, w2, w3)          # one-time weight prep
    out = fc_forward(x, params)
    jax.block_until_ready(out)

    ref = _ref_forward(x, w1, w2, w3)
    assert out.shape == (B, OUT_DIM)
    # bf16 weights/activations/output with f32 accumulation -> loosened tolerance.
    assert jnp.allclose(out, ref, atol=5e-2, rtol=5e-2), (
        float(jnp.max(jnp.abs(out - ref)))
    )

    print("KERNEL_OK")
</pallas_src>

<mosaic_0001>
module attributes {stable_mosaic.version = 11 : i64} {
  func.func @fc_kernel(%arg0: i32, %arg1: memref<16x784xf32, #tpu.memory_space<vmem>>, %arg2: memref<784x384xbf16, #tpu.memory_space<vmem>>, %arg3: memref<384x128xbf16, #tpu.memory_space<vmem>>, %arg4: memref<128x128xbf16, #tpu.memory_space<vmem>>, %arg5: memref<16x128xbf16, #tpu.memory_space<vmem>>) attributes {dimension_semantics = [#tpu.dimension_semantics<parallel>], iteration_bounds = array<i64: 1>, scalar_prefetch = 0 : i64, scratch_operands = 0 : i64, tpu.core_type = #tpu.core_type<tc>, window_params = [{transform_indices = @transform_0, window_bounds = array<i64: 16, 784>}, {pipeline_mode = #tpu.pipeline_mode<synchronous>, transform_indices = @transform_1, window_bounds = array<i64: 784, 384>}, {pipeline_mode = #tpu.pipeline_mode<synchronous>, transform_indices = @transform_2, window_bounds = array<i64: 384, 128>}, {pipeline_mode = #tpu.pipeline_mode<synchronous>, transform_indices = @transform_3, window_bounds = array<i64: 128, 128>}, {transform_indices = @transform_4, window_bounds = array<i64: 16, 128>}]} {
    %c0 = arith.constant 0 : index
    %c0_0 = arith.constant 0 : index
    %0 = vector.load %arg1[%c0, %c0_0] : memref<16x784xf32, #tpu.memory_space<vmem>>, vector<16x784xf32>
    %1 = arith.truncf %0 : vector<16x784xf32> to vector<16x784xbf16>
    %c0_1 = arith.constant 0 : index
    %c0_2 = arith.constant 0 : index
    %2 = vector.load %arg2[%c0_1, %c0_2] : memref<784x384xbf16, #tpu.memory_space<vmem>>, vector<784x384xbf16>
    %cst = arith.constant dense<0.000000e+00> : vector<16x384xf32>
    %3 = tpu.matmul %1, %2, %cst {dimension_numbers = #tpu.dot_dimension_numbers<[1], [0], [0], [1], [0, 0, 1, 1], [], []>} : vector<16x784xbf16>, vector<784x384xbf16>, vector<16x384xf32> -> vector<16x384xf32>
    %cst_3 = arith.constant 0.000000e+00 : f32
    %4 = vector.broadcast %cst_3 : f32 to vector<16x384xf32>
    %5 = arith.maximumf %3, %4 : vector<16x384xf32>
    %6 = arith.truncf %5 : vector<16x384xf32> to vector<16x384xbf16>
    %c0_4 = arith.constant 0 : index
    %c0_5 = arith.constant 0 : index
    %7 = vector.load %arg3[%c0_4, %c0_5] : memref<384x128xbf16, #tpu.memory_space<vmem>>, vector<384x128xbf16>
    %cst_6 = arith.constant dense<0.000000e+00> : vector<16x128xf32>
    %8 = tpu.matmul %6, %7, %cst_6 {dimension_numbers = #tpu.dot_dimension_numbers<[1], [0], [0], [1], [0, 0, 1, 1], [], []>} : vector<16x384xbf16>, vector<384x128xbf16>, vector<16x128xf32> -> vector<16x128xf32>
    %cst_7 = arith.constant 0.000000e+00 : f32
    %9 = vector.broadcast %cst_7 : f32 to vector<16x128xf32>
    %10 = arith.maximumf %8, %9 : vector<16x128xf32>
    %11 = arith.truncf %10 : vector<16x128xf32> to vector<16x128xbf16>
    %c0_8 = arith.constant 0 : index
    %c0_9 = arith.constant 0 : index
    %12 = vector.load %arg4[%c0_8, %c0_9] : memref<128x128xbf16, #tpu.memory_space<vmem>>, vector<128x128xbf16>
    %cst_10 = arith.constant dense<0.000000e+00> : vector<16x128xf32>
    %13 = tpu.matmul %11, %12, %cst_10 {dimension_numbers = #tpu.dot_dimension_numbers<[1], [0], [0], [1], [0, 0, 1, 1], [], []>} : vector<16x128xbf16>, vector<128x128xbf16>, vector<16x128xf32> -> vector<16x128xf32>
    %14 = arith.truncf %13 : vector<16x128xf32> to vector<16x128xbf16>
    %c0_11 = arith.constant 0 : index
    %c0_12 = arith.constant 0 : index
    %15 = vector.load %arg5[%c0_11, %c0_12] : memref<16x128xbf16, #tpu.memory_space<vmem>>, vector<16x128xbf16>
    tpu.vector_store %arg5[%c0_11, %c0_12], %14 {strides = array<i32>} : memref<16x128xbf16, #tpu.memory_space<vmem>>, vector<16x128xbf16>,
    return
  }
  func.func @transform_0(%arg0: i32) -> (i32, i32) {
    %c0_i32 = arith.constant 0 : i32
    %c0_i32_0 = arith.constant 0 : i32
    return %arg0, %c0_i32 : i32, i32
  }
  func.func @transform_1(%arg0: i32) -> (i32, i32) {
    %c0_i32 = arith.constant 0 : i32
    %c0_i32_0 = arith.constant 0 : i32
    %c0_i32_1 = arith.constant 0 : i32
    return %c0_i32, %c0_i32_0 : i32, i32
  }
  func.func @transform_2(%arg0: i32) -> (i32, i32) {
    %c0_i32 = arith.constant 0 : i32
    %c0_i32_0 = arith.constant 0 : i32
    %c0_i32_1 = arith.constant 0 : i32
    return %c0_i32, %c0_i32_0 : i32, i32
  }
  func.func @transform_3(%arg0: i32) -> (i32, i32) {
    %c0_i32 = arith.constant 0 : i32
    %c0_i32_0 = arith.constant 0 : i32
    %c0_i32_1 = arith.constant 0 : i32
    return %c0_i32, %c0_i32_0 : i32, i32
  }
  func.func @transform_4(%arg0: i32) -> (i32, i32) {
    %c0_i32 = arith.constant 0 : i32
    %c0_i32_0 = arith.constant 0 : i32
    return %arg0, %c0_i32 : i32, i32
  }
}

</mosaic_0001>

<llo_original>
// kernel: tpu_custom_call.1
$region0: #{tpu_custom_call.1}
  #allocation0 [shape = 'u32[]', space=smem, size = 0x4, offset = 0x4, fixed_abs, tag = 'smem constant byte address 0x4 - core index']
  #allocation1 [shape = 'u32[144,128]{1,0:T(1,128)}', space=vmem, size = 0x12000, scoped, tag = 'internal scratch']
  %s0 = inlined_call_operand.hbm [shape: f32[16,784], index: 0, kind: input, shape index: {}]
  %s1 = inlined_call_operand.hbm [shape: bf16[784,384], index: 1, kind: input, shape index: {}]
  %s2 = inlined_call_operand.hbm [shape: bf16[384,128], index: 2, kind: input, shape index: {}]
  %s3 = inlined_call_operand.hbm [shape: bf16[128,128], index: 3, kind: input, shape index: {}]
  %s4 = inlined_call_operand.hbm [shape: bf16[16,128], index: 4, kind: output, shape index: {}]
  %s5 = sld [smem:[#allocation0]]
  $region42: #{tpu_custom_call.1} parent=0
    _
  %s7 = ssub.s32 1, %s5
  %s8 = scalar_select 0, %s7, %s5
  $region1: #{tpu_custom_call.1} parent=0
    #allocation2 [shape = 'u8[57344]{0}', space=vmem, size = 0xe000, scoped, tag = 'input window, operand 0, single buffered']
    #allocation3 [shape = 's32[1]{0}', space=sflag, size = 0x4, scoped, tag = 'scoped memory for tpu_custom_call.1']
    #allocation4 [shape = 's32[1]{0}', space=sflag, size = 0x4, scoped, tag = 'scoped memory for tpu_custom_call.1']
    #allocation5 [shape = 'u8[602112]{0}', space=vmem, size = 0x93000, scoped, tag = 'input window, operand 1, single buffered']
    #allocation6 [shape = 's32[1]{0}', space=sflag, size = 0x4, scoped, tag = 'scoped memory for tpu_custom_call.1']
    #allocation7 [shape = 'u8[98304]{0}', space=vmem, size = 0x18000, scoped, tag = 'input window, operand 2, single buffered']
    #allocation8 [shape = 'u8[32768]{0}', space=vmem, size = 0x8000, scoped, tag = 'input window, operand 3, single buffered']
    #allocation9 [shape = 's32[1]{0}', space=sflag, size = 0x4, scoped, tag = 'scoped memory for tpu_custom_call.1']
    #allocation10 [shape = 'u8[4096]{0}', space=vmem, size = 0x1000, scoped, tag = 'output window, operand 0, single buffered']
    %9 = vsyncpa [#allocation3], 0
    %10 = vsyncpa [#allocation6], 0
    %11 = vsyncpa [#allocation9], 0
    %12 = vsyncpa [#allocation4], 0
    // Predicated region
    $region2: #{tpu_custom_call.1} parent=1 // pred_check
      _
    $region3: #{tpu_custom_call.1} parent=1 // pred_check_branch
      %14 = sbr.rel (0) target = $region5
    $region4: #{tpu_custom_call.1} parent=1 // pred_region
      %s16 = ssub.s32 1792, 1792
      %17 = vsyncadd [#allocation3], %s16
      %s18 = sshll.u32 [#allocation2], 4
      %s19 = int_to_ptr.vmem [resolvable:$true] %s18
      %24 = dma.hbm_to_vmem [thread:$0]  %s0, 1792, %s19, [#allocation3], 896, 896, 56
    $region5: #{tpu_custom_call.1} parent=1 // pred_fallthru
      _
    // Predicated region
    $region6: #{tpu_custom_call.1} parent=1 // pred_check
      _
    $region7: #{tpu_custom_call.1} parent=1 // pred_check_branch
      %26 = sbr.rel (0) target = $region9
    $region8: #{tpu_custom_call.1} parent=1 // pred_region
      %s28 = ssub.s32 18816, 18816
      %29 = vsyncadd [#allocation6], %s28
      %s30 = sshll.u32 [#allocation5], 4
      %s31 = int_to_ptr.vmem [resolvable:$true] %s30
      %36 = dma.hbm_to_vmem [thread:$0]  %s1, 18816, %s31, [#allocation6], 192, 192, 12
    $region9: #{tpu_custom_call.1} parent=1 // pred_fallthru
      _
    // Predicated region
    $region10: #{tpu_custom_call.1} parent=1 // pred_check
      _
    $region11: #{tpu_custom_call.1} parent=1 // pred_check_branch
      %38 = sbr.rel (0) target = $region13
    $region12: #{tpu_custom_call.1} parent=1 // pred_region
      %s40 = ssub.s32 3072, 3072
      %41 = vsyncadd [#allocation6], %s40
      %s42 = sshll.u32 [#allocation7], 4
      %s43 = int_to_ptr.vmem [resolvable:$true] %s42
      %48 = dma.hbm_to_vmem [thread:$0]  %s2, 3072, %s43, [#allocation6], 64, 64, 4
    $region13: #{tpu_custom_call.1} parent=1 // pred_fallthru
      _
    // Predicated region
    $region14: #{tpu_custom_call.1} parent=1 // pred_check
      _
    $region15: #{tpu_custom_call.1} parent=1 // pred_check_branch
      %50 = sbr.rel (0) target = $region17
    $region16: #{tpu_custom_call.1} parent=1 // pred_region
      %s52 = ssub.s32 1024, 1024
      %53 = vsyncadd [#allocation9], %s52
      %s54 = sshll.u32 [#allocation8], 4
      %s55 = int_to_ptr.vmem [resolvable:$true] %s54
      %60 = dma.hbm_to_vmem [thread:$0]  %s3, 1024, %s55, [#allocation9], 64, 64, 4
    $region17: #{tpu_custom_call.1} parent=1 // pred_fallthru
      _
    // Predicated region
    $region18: #{tpu_custom_call.1} parent=1 // pred_check
      _
    $region19: #{tpu_custom_call.1} parent=1 // pred_check_branch
      %62 = sbr.rel (0) target = $region21
    $region20: #{tpu_custom_call.1} parent=1 // pred_region
      %63 = dma.done [#allocation3], 1792
    $region21: #{tpu_custom_call.1} parent=1 // pred_fallthru
      _
    // Predicated region
    $region22: #{tpu_custom_call.1} parent=1 // pred_check
      _
    $region23: #{tpu_custom_call.1} parent=1 // pred_check_branch
      %65 = sbr.rel (0) target = $region25
    $region24: #{tpu_custom_call.1} parent=1 // pred_region
      %66 = dma.done [#allocation6], 18816
    $region25: #{tpu_custom_call.1} parent=1 // pred_fallthru
      _
    // Predicated region
    $region26: #{tpu_custom_call.1} parent=1 // pred_check
      _
    $region27: #{tpu_custom_call.1} parent=1 // pred_check_branch
      %68 = sbr.rel (0) target = $region29
    $region28: #{tpu_custom_call.1} parent=1 // pred_region
      %69 = dma.done [#allocation6], 3072
    $region29: #{tpu_custom_call.1} parent=1 // pred_fallthru
      _
    // Predicated region
    $region30: #{tpu_custom_call.1} parent=1 // pred_check
      _
    $region31: #{tpu_custom_call.1} parent=1 // pred_check_branch
      %71 = sbr.rel (0) target = $region33
    $region32: #{tpu_custom_call.1} parent=1 // pred_region
      %72 = dma.done [#allocation9], 1024
    $region33: #{tpu_custom_call.1} parent=1 // pred_fallthru
      _
    %v74 = vld [vmem:[#allocation2] sm:$0xff]
    %v75 = vld [vmem:[#allocation2 + $0x8] sm:$0xff]
    %v76 = vld [vmem:[#allocation2 + $0x10] sm:$0xff]
    %v77 = vld [vmem:[#allocation2 + $0x18] sm:$0xff]
    %v78 = vld [vmem:[#allocation2 + $0x20] sm:$0xff]
    %v79 = vld [vmem:[#allocation2 + $0x28] sm:$0xff]
    %v80 = vld [vmem:[#allocation2 + $0x30] sm:$0xff]
    %v81 = vld [vmem:[#allocation2 + $0x38] sm:$0xff]
    %v82 = vld [vmem:[#allocation2 + $0x40] sm:$0xff]
    %v83 = vld [vmem:[#allocation2 + $0x48] sm:$0xff]
    %v84 = vld [vmem:[#allocation2 + $0x50] sm:$0xff]
    %v85 = vld [vmem:[#allocation2 + $0x58] sm:$0xff]
    %v86 = vld [vmem:[#allocation2 + $0x60] sm:$0xff]
    %v87 = vld [vmem:[#allocation2 + $0x68] sm:$0xff]
    %v88 = vpack.c.bf16 %v81, %v74
    %v89 = vpack.c.bf16 %v82, %v75
    %v90 = vpack.c.bf16 %v83, %v76
    %v91 = vpack.c.bf16 %v84, %v77
    %v92 = vpack.c.bf16 %v85, %v78
    %v93 = vpack.c.bf16 %v86, %v79
    %v94 = vpack.c.bf16 %v87, %v80
    %v95 = vld [vmem:[#allocation5] sm:$0xff]
    %v96 = vld [vmem:[#allocation5 + $0x8] sm:$0xf]
    %v97 = vld [vmem:[#allocation5 + $0xc] sm:$0xff]
    %v98 = vld [vmem:[#allocation5 + $0x14] sm:$0xf]
    %v99 = vld [vmem:[#allocation5 + $0x18] sm:$0xff]
    %v100 = vld [vmem:[#allocation5 + $0x20] sm:$0xf]
    %v101 = vld [vmem:[#allocation5 + $0x24] sm:$0xff]
    %v102 = vld [vmem:[#allocation5 + $0x2c] sm:$0xf]
    %v103 = vld [vmem:[#allocation5 + $0x30] sm:$0xff]
    %v104 = vld [vmem:[#allocation5 + $0x38] sm:$0xf]
    %v105 = vld [vmem:[#allocation5 + $0x3c] sm:$0xff]
    %v106 = vld [vmem:[#allocation5 + $0x44] sm:$0xf]
    %v107 = vld [vmem:[#allocation5 + $0x48] sm:$0xff]
    %v108 = vld [vmem:[#allocation5 + $0x50] sm:$0xf]
    %v109 = vld [vmem:[#allocation5 + $0x54] sm:$0xff]
    %v110 = vld [vmem:[#allocation5 + $0x5c] sm:$0xf]
    %v111 = vld [vmem:[#allocation5 + $0x60] sm:$0xff]
    %v112 = vld [vmem:[#allocation5 + $0x68] sm:$0xf]
    %v113 = vld [vmem:[#allocation5 + $0x6c] sm:$0xff]
    %v114 = vld [vmem:[#allocation5 + $0x74] sm:$0xf]
    %v115 = vld [vmem:[#allocation5 + $0x78] sm:$0xff]
    %v116 = vld [vmem:[#allocation5 + $0x80] sm:$0xf]
    %v117 = vld [vmem:[#allocation5 + $0x84] sm:$0xff]
    %v118 = vld [vmem:[#allocation5 + $0x8c] sm:$0xf]
    %v119 = vld [vmem:[#allocation5 + $0x90] sm:$0xff]
    %v120 = vld [vmem:[#allocation5 + $0x98] sm:$0xf]
    %v121 = vld [vmem:[#allocation5 + $0x9c] sm:$0xff]
    %v122 = vld [vmem:[#allocation5 + $0xa4] sm:$0xf]
    %v123 = vld [vmem:[#allocation5 + $0xa8] sm:$0xff]
    %v124 = vld [vmem:[#allocation5 + $0xb0] sm:$0xf]
    %v125 = vld [vmem:[#allocation5 + $0xb4] sm:$0xff]
    %v126 = vld [vmem:[#allocation5 + $0xbc] sm:$0xf]
    %v127 = vld [vmem:[#allocation5 + $0xc0] sm:$0xff]
    %v128 = vld [vmem:[#allocation5 + $0xc8] sm:$0xf]
    %v129 = vld [vmem:[#allocation5 + $0xcc] sm:$0xff]
    %v130 = vld [vmem:[#allocation5 + $0xd4] sm:$0xf]
    %v131 = vld [vmem:[#allocation5 + $0xd8] sm:$0xff]
    %v132 = vld [vmem:[#allocation5 + $0xe0] sm:$0xf]
    %v133 = vld [vmem:[#allocation5 + $0xe4] sm:$0xff]
    %v134 = vld [vmem:[#allocation5 + $0xec] sm:$0xf]
    %v135 = vld [vmem:[#allocation5 + $0xf0] sm:$0xff]
    %v136 = vld [vmem:[#allocation5 + $0xf8] sm:$0xf]
    %v137 = vld [vmem:[#allocation5 + $0xfc] sm:$0xff]
    %v138 = vld [vmem:[#allocation5 + $0x104] sm:$0xf]
    %v139 = vld [vmem:[#allocation5 + $0x108] sm:$0xff]
    %v140 = vld [vmem:[#allocation5 + $0x110] sm:$0xf]
    %v141 = vld [vmem:[#allocation5 + $0x114] sm:$0xff]
    %v142 = vld [vmem:[#allocation5 + $0x11c] sm:$0xf]
    %v143 = vld [vmem:[#allocation5 + $0x120] sm:$0xff]
    %v144 = vld [vmem:[#allocation5 + $0x128] sm:$0xf]
    %v145 = vld [vmem:[#allocation5 + $0x12c] sm:$0xff]
    %v146 = vld [vmem:[#allocation5 + $0x134] sm:$0xf]
    %v147 = vld [vmem:[#allocation5 + $0x138] sm:$0xff]
    %v148 = vld [vmem:[#allocation5 + $0x140] sm:$0xf]
    %v149 = vld [vmem:[#allocation5 + $0x144] sm:$0xff]
    %v150 = vld [vmem:[#allocation5 + $0x14c] sm:$0xf]
    %v151 = vld [vmem:[#allocation5 + $0x150] sm:$0xff]
    %v152 = vld [vmem:[#allocation5 + $0x158] sm:$0xf]
    %v153 = vld [vmem:[#allocation5 + $0x15c] sm:$0xff]
    %v154 = vld [vmem:[#allocation5 + $0x164] sm:$0xf]
    %v155 = vld [vmem:[#allocation5 + $0x168] sm:$0xff]
    %v156 = vld [vmem:[#allocation5 + $0x170] sm:$0xf]
    %v157 = vld [vmem:[#allocation5 + $0x174] sm:$0xff]
    %v158 = vld [vmem:[#allocation5 + $0x17c] sm:$0xf]
    %v159 = vld [vmem:[#allocation5 + $0x180] sm:$0xff]
    %v160 = vld [vmem:[#allocation5 + $0x188] sm:$0xf]
    %v161 = vld [vmem:[#allocation5 + $0x18c] sm:$0xff]
    %v162 = vld [vmem:[#allocation5 + $0x194] sm:$0xf]
    %v163 = vld [vmem:[#allocation5 + $0x198] sm:$0xff]
    %v164 = vld [vmem:[#allocation5 + $0x1a0] sm:$0xf]
    %v165 = vld [vmem:[#allocation5 + $0x1a4] sm:$0xff]
    %v166 = vld [vmem:[#allocation5 + $0x1ac] sm:$0xf]
    %v167 = vld [vmem:[#allocation5 + $0x1b0] sm:$0xff]
    %v168 = vld [vmem:[#allocation5 + $0x1b8] sm:$0xf]
    %v169 = vld [vmem:[#allocation5 + $0x1bc] sm:$0xff]
    %v170 = vld [vmem:[#allocation5 + $0x1c4] sm:$0xf]
    %v171 = vld [vmem:[#allocation5 + $0x1c8] sm:$0xff]
    %v172 = vld [vmem:[#allocation5 + $0x1d0] sm:$0xf]
    %v173 = vld [vmem:[#allocation5 + $0x1d4] sm:$0xff]
    %v174 = vld [vmem:[#allocation5 + $0x1dc] sm:$0xf]
    %v175 = vld [vmem:[#allocation5 + $0x1e0] sm:$0xff]
    %v176 = vld [vmem:[#allocation5 + $0x1e8] sm:$0xf]
    %v177 = vld [vmem:[#allocation5 + $0x1ec] sm:$0xff]
    %v178 = vld [vmem:[#allocation5 + $0x1f4] sm:$0xf]
    %v179 = vld [vmem:[#allocation5 + $0x1f8] sm:$0xff]
    %v180 = vld [vmem:[#allocation5 + $0x200] sm:$0xf]
    %v181 = vld [vmem:[#allocation5 + $0x204] sm:$0xff]
    %v182 = vld [vmem:[#allocation5 + $0x20c] sm:$0xf]
    %v183 = vld [vmem:[#allocation5 + $0x210] sm:$0xff]
    %v184 = vld [vmem:[#allocation5 + $0x218] sm:$0xf]
    %v185 = vld [vmem:[#allocation5 + $0x21c] sm:$0xff]
    %v186 = vld [vmem:[#allocation5 + $0x224] sm:$0xf]
    %v187 = vld [vmem:[#allocation5 + $0x228] sm:$0xff]
    %v188 = vld [vmem:[#allocation5 + $0x230] sm:$0xf]
    %v189 = vld [vmem:[#allocation5 + $0x234] sm:$0xff]
    %v190 = vld [vmem:[#allocation5 + $0x23c] sm:$0xf]
    %v191 = vld [vmem:[#allocation5 + $0x240] sm:$0xff]
    %v192 = vld [vmem:[#allocation5 + $0x248] sm:$0xf]
    %v193 = vld [vmem:[#allocation5 + $0x24c] sm:$0xff]
    %v194 = vld [vmem:[#allocation5 + $0x254] sm:$0xf]
    %v195 = vld [vmem:[#allocation5 + $0x258] sm:$0xff]
    %v196 = vld [vmem:[#allocation5 + $0x260] sm:$0xf]
    %v197 = vld [vmem:[#allocation5 + $0x264] sm:$0xff]
    %v198 = vld [vmem:[#allocation5 + $0x26c] sm:$0xf]
    %v199 = vld [vmem:[#allocation5 + $0x270] sm:$0xff]
    %v200 = vld [vmem:[#allocation5 + $0x278] sm:$0xf]
    %v201 = vld [vmem:[#allocation5 + $0x27c] sm:$0xff]
    %v202 = vld [vmem:[#allocation5 + $0x284] sm:$0xf]
    %v203 = vld [vmem:[#allocation5 + $0x288] sm:$0xff]
    %v204 = vld [vmem:[#allocation5 + $0x290] sm:$0xf]
    %v205 = vld [vmem:[#allocation5 + $0x294] sm:$0xff]
    %v206 = vld [vmem:[#allocation5 + $0x29c] sm:$0xf]
    %v207 = vld [vmem:[#allocation5 + $0x2a0] sm:$0xff]
    %v208 = vld [vmem:[#allocation5 + $0x2a8] sm:$0xf]
    %v209 = vld [vmem:[#allocation5 + $0x2ac] sm:$0xff]
    %v210 = vld [vmem:[#allocation5 + $0x2b4] sm:$0xf]
    %v211 = vld [vmem:[#allocation5 + $0x2b8] sm:$0xff]
    %v212 = vld [vmem:[#allocation5 + $0x2c0] sm:$0xf]
    %v213 = vld [vmem:[#allocation5 + $0x2c4] sm:$0xff]
    %v214 = vld [vmem:[#allocation5 + $0x2cc] sm:$0xf]
    %v215 = vld [vmem:[#allocation5 + $0x2d0] sm:$0xff]
    %v216 = vld [vmem:[#allocation5 + $0x2d8] sm:$0xf]
    %v217 = vld [vmem:[#allocation5 + $0x2dc] sm:$0xff]
    %v218 = vld [vmem:[#allocation5 + $0x2e4] sm:$0xf]
    %v219 = vld [vmem:[#allocation5 + $0x2e8] sm:$0xff]
    %v220 = vld [vmem:[#allocation5 + $0x2f0] sm:$0xf]
    %v221 = vld [vmem:[#allocation5 + $0x2f4] sm:$0xff]
    %v222 = vld [vmem:[#allocation5 + $0x2fc] sm:$0xf]
    %v223 = vld [vmem:[#allocation5 + $0x300] sm:$0xff]
    %v224 = vld [vmem:[#allocation5 + $0x308] sm:$0xf]
    %v225 = vld [vmem:[#allocation5 + $0x30c] sm:$0xff]
    %v226 = vld [vmem:[#allocation5 + $0x314] sm:$0xf]
    %v227 = vld [vmem:[#allocation5 + $0x318] sm:$0xff]
    %v228 = vld [vmem:[#allocation5 + $0x320] sm:$0xf]
    %v229 = vld [vmem:[#allocation5 + $0x324] sm:$0xff]
    %v230 = vld [vmem:[#allocation5 + $0x32c] sm:$0xf]
    %v231 = vld [vmem:[#allocation5 + $0x330] sm:$0xff]
    %v232 = vld [vmem:[#allocation5 + $0x338] sm:$0xf]
    %v233 = vld [vmem:[#allocation5 + $0x33c] sm:$0xff]
    %v234 = vld [vmem:[#allocation5 + $0x344] sm:$0xf]
    %v235 = vld [vmem:[#allocation5 + $0x348] sm:$0xff]
    %v236 = vld [vmem:[#allocation5 + $0x350] sm:$0xf]
    %v237 = vld [vmem:[#allocation5 + $0x354] sm:$0xff]
    %v238 = vld [vmem:[#allocation5 + $0x35c] sm:$0xf]
    %v239 = vld [vmem:[#allocation5 + $0x360] sm:$0xff]
    %v240 = vld [vmem:[#allocation5 + $0x368] sm:$0xf]
    %v241 = vld [vmem:[#allocation5 + $0x36c] sm:$0xff]
    %v242 = vld [vmem:[#allocation5 + $0x374] sm:$0xf]
    %v243 = vld [vmem:[#allocation5 + $0x378] sm:$0xff]
    %v244 = vld [vmem:[#allocation5 + $0x380] sm:$0xf]
    %v245 = vld [vmem:[#allocation5 + $0x384] sm:$0xff]
    %v246 = vld [vmem:[#allocation5 + $0x38c] sm:$0xf]
    %v247 = vld [vmem:[#allocation5 + $0x390] sm:$0xff]
    %v248 = vld [vmem:[#allocation5 + $0x398] sm:$0xf]
    %v249 = vld [vmem:[#allocation5 + $0x39c] sm:$0xff]
    %v250 = vld [vmem:[#allocation5 + $0x3a4] sm:$0xf]
    %v251 = vld [vmem:[#allocation5 + $0x3a8] sm:$0xff]
    %v252 = vld [vmem:[#allocation5 + $0x3b0] sm:$0xf]
    %v253 = vld [vmem:[#allocation5 + $0x3b4] sm:$0xff]
    %v254 = vld [vmem:[#allocation5 + $0x3bc] sm:$0xf]
    %v255 = vld [vmem:[#allocation5 + $0x3c0] sm:$0xff]
    %v256 = vld [vmem:[#allocation5 + $0x3c8] sm:$0xf]
    %v257 = vld [vmem:[#allocation5 + $0x3cc] sm:$0xff]
    %v258 = vld [vmem:[#allocation5 + $0x3d4] sm:$0xf]
    %v259 = vld [vmem:[#allocation5 + $0x3d8] sm:$0xff]
    %v260 = vld [vmem:[#allocation5 + $0x3e0] sm:$0xf]
    %v261 = vld [vmem:[#allocation5 + $0x3e4] sm:$0xff]
    %v262 = vld [vmem:[#allocation5 + $0x3ec] sm:$0xf]
    %v263 = vld [vmem:[#allocation5 + $0x3f0] sm:$0xff]
    %v264 = vld [vmem:[#allocation5 + $0x3f8] sm:$0xf]
    %v265 = vld [vmem:[#allocation5 + $0x3fc] sm:$0xff]
    %v266 = vld [vmem:[#allocation5 + $0x404] sm:$0xf]
    %v267 = vld [vmem:[#allocation5 + $0x408] sm:$0xff]
    %v268 = vld [vmem:[#allocation5 + $0x410] sm:$0xf]
    %v269 = vld [vmem:[#allocation5 + $0x414] sm:$0xff]
    %v270 = vld [vmem:[#allocation5 + $0x41c] sm:$0xf]
    %v271 = vld [vmem:[#allocation5 + $0x420] sm:$0xff]
    %v272 = vld [vmem:[#allocation5 + $0x428] sm:$0xf]
    %v273 = vld [vmem:[#allocation5 + $0x42c] sm:$0xff]
    %v274 = vld [vmem:[#allocation5 + $0x434] sm:$0xf]
    %v275 = vld [vmem:[#allocation5 + $0x438] sm:$0xff]
    %v276 = vld [vmem:[#allocation5 + $0x440] sm:$0xf]
    %v277 = vld [vmem:[#allocation5 + $0x444] sm:$0xff]
    %v278 = vld [vmem:[#allocation5 + $0x44c] sm:$0xf]
    %v279 = vld [vmem:[#allocation5 + $0x450] sm:$0xff]
    %v280 = vld [vmem:[#allocation5 + $0x458] sm:$0xf]
    %v281 = vld [vmem:[#allocation5 + $0x45c] sm:$0xff]
    %v282 = vld [vmem:[#allocation5 + $0x464] sm:$0xf]
    %v283 = vld [vmem:[#allocation5 + $0x468] sm:$0xff]
    %v284 = vld [vmem:[#allocation5 + $0x470] sm:$0xf]
    %v285 = vld [vmem:[#allocation5 + $0x474] sm:$0xff]
    %v286 = vld [vmem:[#allocation5 + $0x47c] sm:$0xf]
    %v287 = vld [vmem:[#allocation5 + $0x480] sm:$0xff]
    %v288 = vld [vmem:[#allocation5 + $0x488] sm:$0xf]
    %v289 = vld [vmem:[#allocation5 + $0x48c] sm:$0xff]
    %v290 = vld [vmem:[#allocation5 + $0x494] sm:$0xf]
    %v487 = vunpack.c.l.b16 %v95
    %v488 = vunpack.c.h.b16 %v95
    %v489 = vunpack.c.l.b16 %v96
    %v490 = vunpack.c.l.b16 %v97
    %v491 = vunpack.c.h.b16 %v97
    %v492 = vunpack.c.l.b16 %v98
    %v493 = vunpack.c.l.b16 %v99
    %v494 = vunpack.c.h.b16 %v99
    %v495 = vunpack.c.l.b16 %v100
    %v496 = vunpack.c.l.b16 %v101
    %v497 = vunpack.c.h.b16 %v101
    %v498 = vunpack.c.l.b16 %v102
    %v499 = vunpack.c.l.b16 %v103
    %v500 = vunpack.c.h.b16 %v103
    %v501 = vunpack.c.l.b16 %v104
    %v502 = vunpack.c.l.b16 %v105
    %v503 = vunpack.c.h.b16 %v105
    %v504 = vunpack.c.l.b16 %v106
    %v505 = vunpack.c.l.b16 %v107
    %v506 = vunpack.c.h.b16 %v107
    %v507 = vunpack.c.l.b16 %v108
    %v508 = vunpack.c.l.b16 %v109
    %v509 = vunpack.c.h.b16 %v109
    %v510 = vunpack.c.l.b16 %v110
    %v511 = vunpack.c.l.b16 %v111
    %v512 = vunpack.c.h.b16 %v111
    %v513 = vunpack.c.l.b16 %v112
    %v514 = vunpack.c.l.b16 %v113
    %v515 = vunpack.c.h.b16 %v113
    %v516 = vunpack.c.l.b16 %v114
    %v517 = vunpack.c.l.b16 %v115
    %v518 = vunpack.c.h.b16 %v115
    %v519 = vunpack.c.l.b16 %v116
    %v520 = vunpack.c.l.b16 %v117
    %v521 = vunpack.c.h.b16 %v117
    %v522 = vunpack.c.l.b16 %v118
    %v523 = vunpack.c.l.b16 %v119
    %v524 = vunpack.c.h.b16 %v119
    %v525 = vunpack.c.l.b16 %v120
    %v526 = vunpack.c.l.b16 %v121
    %v527 = vunpack.c.h.b16 %v121
    %v528 = vunpack.c.l.b16 %v122
    %v529 = vunpack.c.l.b16 %v123
    %v530 = vunpack.c.h.b16 %v123
    %v531 = vunpack.c.l.b16 %v124
    %v532 = vunpack.c.l.b16 %v125
    %v533 = vunpack.c.h.b16 %v125
    %v534 = vunpack.c.l.b16 %v126
    %v535 = vunpack.c.l.b16 %v127
    %v536 = vunpack.c.h.b16 %v127
    %v537 = vunpack.c.l.b16 %v128
    %v538 = vunpack.c.l.b16 %v129
    %v539 = vunpack.c.h.b16 %v129
    %v540 = vunpack.c.l.b16 %v130
    %v541 = vunpack.c.l.b16 %v131
    %v542 = vunpack.c.h.b16 %v131
    %v543 = vunpack.c.l.b16 %v132
    %v544 = vunpack.c.l.b16 %v133
    %v545 = vunpack.c.h.b16 %v133
    %v546 = vunpack.c.l.b16 %v134
    %v547 = vunpack.c.l.b16 %v135
    %v548 = vunpack.c.h.b16 %v135
    %v549 = vunpack.c.l.b16 %v136
    %v550 = vunpack.c.l.b16 %v137
    %v551 = vunpack.c.h.b16 %v137
    %v552 = vunpack.c.l.b16 %v138
    %v553 = vunpack.c.l.b16 %v139
    %v554 = vunpack.c.h.b16 %v139
    %v555 = vunpack.c.l.b16 %v140
    %v556 = vunpack.c.l.b16 %v141
    %v557 = vunpack.c.h.b16 %v141
    %v558 = vunpack.c.l.b16 %v142
    %v559 = vunpack.c.l.b16 %v143
    %v560 = vunpack.c.h.b16 %v143
    %v561 = vunpack.c.l.b16 %v144
    %v562 = vunpack.c.l.b16 %v145
    %v563 = vunpack.c.h.b16 %v145
    %v564 = vunpack.c.l.b16 %v146
    %v565 = vunpack.c.l.b16 %v147
    %v566 = vunpack.c.h.b16 %v147
    %v567 = vunpack.c.l.b16 %v148
    %v568 = vunpack.c.l.b16 %v149
    %v569 = vunpack.c.h.b16 %v149
    %v570 = vunpack.c.l.b16 %v150
    %v571 = vunpack.c.l.b16 %v151
    %v572 = vunpack.c.h.b16 %v151
    %v573 = vunpack.c.l.b16 %v152
    %v574 = vunpack.c.l.b16 %v153
    %v575 = vunpack.c.h.b16 %v153
    %v576 = vunpack.c.l.b16 %v154
    %v577 = vunpack.c.l.b16 %v155
    %v578 = vunpack.c.h.b16 %v155
    %v579 = vunpack.c.l.b16 %v156
    %v580 = vunpack.c.l.b16 %v157
    %v581 = vunpack.c.h.b16 %v157
    %v582 = vunpack.c.l.b16 %v158
    %v583 = vunpack.c.l.b16 %v159
    %v584 = vunpack.c.h.b16 %v159
    %v585 = vunpack.c.l.b16 %v160
    %v586 = vunpack.c.l.b16 %v161
    %v587 = vunpack.c.h.b16 %v161
    %v588 = vunpack.c.l.b16 %v162
    %v589 = vunpack.c.l.b16 %v163
    %v590 = vunpack.c.h.b16 %v163
    %v591 = vunpack.c.l.b16 %v164
    %v592 = vunpack.c.l.b16 %v165
    %v593 = vunpack.c.h.b16 %v165
    %v594 = vunpack.c.l.b16 %v166
    %v595 = vunpack.c.l.b16 %v167
    %v596 = vunpack.c.h.b16 %v167
    %v597 = vunpack.c.l.b16 %v168
    %v598 = vunpack.c.l.b16 %v169
    %v599 = vunpack.c.h.b16 %v169
    %v600 = vunpack.c.l.b16 %v170
    %v601 = vunpack.c.l.b16 %v171
    %v602 = vunpack.c.h.b16 %v171
    %v603 = vunpack.c.l.b16 %v172
    %v604 = vunpack.c.l.b16 %v173
    %v605 = vunpack.c.h.b16 %v173
    %v606 = vunpack.c.l.b16 %v174
    %v607 = vunpack.c.l.b16 %v175
    %v608 = vunpack.c.h.b16 %v175
    %v609 = vunpack.c.l.b16 %v176
    %v610 = vunpack.c.l.b16 %v177
    %v611 = vunpack.c.h.b16 %v177
    %v612 = vunpack.c.l.b16 %v178
    %v613 = vunpack.c.l.b16 %v179
    %v614 = vunpack.c.h.b16 %v179
    %v615 = vunpack.c.l.b16 %v180
    %v616 = vunpack.c.l.b16 %v181
    %v617 = vunpack.c.h.b16 %v181
    %v618 = vunpack.c.l.b16 %v182
    %v619 = vunpack.c.l.b16 %v183
    %v620 = vunpack.c.h.b16 %v183
    %v621 = vunpack.c.l.b16 %v184
    %v622 = vunpack.c.l.b16 %v185
    %v623 = vunpack.c.h.b16 %v185
    %v624 = vunpack.c.l.b16 %v186
    %v625 = vunpack.c.l.b16 %v187
    %v626 = vunpack.c.h.b16 %v187
    %v627 = vunpack.c.l.b16 %v188
    %v628 = vunpack.c.l.b16 %v189
    %v629 = vunpack.c.h.b16 %v189
    %v630 = vunpack.c.l.b16 %v190
    %v631 = vunpack.c.l.b16 %v191
    %v632 = vunpack.c.h.b16 %v191
    %v633 = vunpack.c.l.b16 %v192
    %v634 = vunpack.c.l.b16 %v193
    %v635 = vunpack.c.h.b16 %v193
    %v636 = vunpack.c.l.b16 %v194
    %v637 = vunpack.c.l.b16 %v195
    %v638 = vunpack.c.h.b16 %v195
    %v639 = vunpack.c.l.b16 %v196
    %v640 = vunpack.c.l.b16 %v197
    %v641 = vunpack.c.h.b16 %v197
    %v642 = vunpack.c.l.b16 %v198
    %v643 = vunpack.c.l.b16 %v199
    %v644 = vunpack.c.h.b16 %v199
    %v645 = vunpack.c.l.b16 %v200
    %v646 = vunpack.c.l.b16 %v201
    %v647 = vunpack.c.h.b16 %v201
    %v648 = vunpack.c.l.b16 %v202
    %v649 = vunpack.c.l.b16 %v203
    %v650 = vunpack.c.h.b16 %v203
    %v651 = vunpack.c.l.b16 %v204
    %v652 = vunpack.c.l.b16 %v205
    %v653 = vunpack.c.h.b16 %v205
    %v654 = vunpack.c.l.b16 %v206
    %v655 = vunpack.c.l.b16 %v207
    %v656 = vunpack.c.h.b16 %v207
    %v657 = vunpack.c.l.b16 %v208
    %v658 = vunpack.c.l.b16 %v209
    %v659 = vunpack.c.h.b16 %v209
    %v660 = vunpack.c.l.b16 %v210
    %v661 = vunpack.c.l.b16 %v211
    %v662 = vunpack.c.h.b16 %v211
    %v663 = vunpack.c.l.b16 %v212
    %v664 = vunpack.c.l.b16 %v213
    %v665 = vunpack.c.h.b16 %v213
    %v666 = vunpack.c.l.b16 %v214
    %v667 = vunpack.c.l.b16 %v215
    %v668 = vunpack.c.h.b16 %v215
    %v669 = vunpack.c.l.b16 %v216
    %v670 = vunpack.c.l.b16 %v217
    %v671 = vunpack.c.h.b16 %v217
    %v672 = vunpack.c.l.b16 %v218
    %v673 = vunpack.c.l.b16 %v219
    %v674 = vunpack.c.h.b16 %v219
    %v675 = vunpack.c.l.b16 %v220
    %v676 = vunpack.c.l.b16 %v221
    %v677 = vunpack.c.h.b16 %v221
    %v678 = vunpack.c.l.b16 %v222
    %v679 = vunpack.c.l.b16 %v223
    %v680 = vunpack.c.h.b16 %v223
    %v681 = vunpack.c.l.b16 %v224
    %v682 = vunpack.c.l.b16 %v225
    %v683 = vunpack.c.h.b16 %v225
    %v684 = vunpack.c.l.b16 %v226
    %v685 = vunpack.c.l.b16 %v227
    %v686 = vunpack.c.h.b16 %v227
    %v687 = vunpack.c.l.b16 %v228
    %v688 = vunpack.c.l.b16 %v229
    %v689 = vunpack.c.h.b16 %v229
    %v690 = vunpack.c.l.b16 %v230
    %v691 = vunpack.c.l.b16 %v231
    %v692 = vunpack.c.h.b16 %v231
    %v693 = vunpack.c.l.b16 %v232
    %v694 = vunpack.c.l.b16 %v233
    %v695 = vunpack.c.h.b16 %v233
    %v696 = vunpack.c.l.b16 %v234
    %v697 = vunpack.c.l.b16 %v235
    %v698 = vunpack.c.h.b16 %v235
    %v699 = vunpack.c.l.b16 %v236
    %v700 = vunpack.c.l.b16 %v237
    %v701 = vunpack.c.h.b16 %v237
    %v702 = vunpack.c.l.b16 %v238
    %v703 = vunpack.c.l.b16 %v239
    %v704 = vunpack.c.h.b16 %v239
    %v705 = vunpack.c.l.b16 %v240
    %v706 = vunpack.c.l.b16 %v241
    %v707 = vunpack.c.h.b16 %v241
    %v708 = vunpack.c.l.b16 %v242
    %v709 = vunpack.c.l.b16 %v243
    %v710 = vunpack.c.h.b16 %v243
    %v711 = vunpack.c.l.b16 %v244
    %v712 = vunpack.c.l.b16 %v245
    %v713 = vunpack.c.h.b16 %v245
    %v714 = vunpack.c.l.b16 %v246
    %v715 = vunpack.c.l.b16 %v247
    %v716 = vunpack.c.h.b16 %v247
    %v717 = vunpack.c.l.b16 %v248
    %v718 = vunpack.c.l.b16 %v249
    %v719 = vunpack.c.h.b16 %v249
    %v720 = vunpack.c.l.b16 %v250
    %v721 = vunpack.c.l.b16 %v251
    %v722 = vunpack.c.h.b16 %v251
    %v723 = vunpack.c.l.b16 %v252
    %v724 = vunpack.c.l.b16 %v253
    %v725 = vunpack.c.h.b16 %v253
    %v726 = vunpack.c.l.b16 %v254
    %v727 = vunpack.c.l.b16 %v255
    %v728 = vunpack.c.h.b16 %v255
    %v729 = vunpack.c.l.b16 %v256
    %v730 = vunpack.c.l.b16 %v257
    %v731 = vunpack.c.h.b16 %v257
    %v732 = vunpack.c.l.b16 %v258
    %v733 = vunpack.c.l.b16 %v259
    %v734 = vunpack.c.h.b16 %v259
    %v735 = vunpack.c.l.b16 %v260
    %v736 = vunpack.c.l.b16 %v261
    %v737 = vunpack.c.h.b16 %v261
    %v738 = vunpack.c.l.b16 %v262
    %v739 = vunpack.c.l.b16 %v263
    %v740 = vunpack.c.h.b16 %v263
    %v741 = vunpack.c.l.b16 %v264
    %v742 = vunpack.c.l.b16 %v265
    %v743 = vunpack.c.h.b16 %v265
    %v744 = vunpack.c.l.b16 %v266
    %v745 = vunpack.c.l.b16 %v267
    %v746 = vunpack.c.h.b16 %v267
    %v747 = vunpack.c.l.b16 %v268
    %v748 = vunpack.c.l.b16 %v269
    %v749 = vunpack.c.h.b16 %v269
    %v750 = vunpack.c.l.b16 %v270
    %v751 = vunpack.c.l.b16 %v271
    %v752 = vunpack.c.h.b16 %v271
    %v753 = vunpack.c.l.b16 %v272
    %v754 = vunpack.c.l.b16 %v273
    %v755 = vunpack.c.h.b16 %v273
    %v756 = vunpack.c.l.b16 %v274
    %v757 = vunpack.c.l.b16 %v275
    %v758 = vunpack.c.h.b16 %v275
    %v759 = vunpack.c.l.b16 %v276
    %v760 = vunpack.c.l.b16 %v277
    %v761 = vunpack.c.h.b16 %v277
    %v762 = vunpack.c.l.b16 %v278
    %v763 = vunpack.c.l.b16 %v279
    %v764 = vunpack.c.h.b16 %v279
    %v765 = vunpack.c.l.b16 %v280
    %v766 = vunpack.c.l.b16 %v281
    %v767 = vunpack.c.h.b16 %v281
    %v768 = vunpack.c.l.b16 %v282
    %v769 = vunpack.c.l.b16 %v283
    %v770 = vunpack.c.h.b16 %v283
    %v771 = vunpack.c.l.b16 %v284
    %v772 = vunpack.c.l.b16 %v285
    %v773 = vunpack.c.h.b16 %v285
    %v774 = vunpack.c.l.b16 %v286
    %v775 = vunpack.c.l.b16 %v287
    %v776 = vunpack.c.h.b16 %v287
    %v777 = vunpack.c.l.b16 %v288
    %v778 = vunpack.c.l.b16 %v289
    %v779 = vunpack.c.h.b16 %v289
    %v780 = vunpack.c.l.b16 %v290
    %v781 = vpack.c.b16 %v490, %v487
    %v782 = vpack.c.b16 %v491, %v488
    %v783 = vpack.c.b16 %v492, %v489
    %v784 = vpack.c.b16 %v496, %v493
    %v785 = vpack.c.b16 %v497, %v494
    %v786 = vpack.c.b16 %v498, %v495
    %v787 = vpack.c.b16 %v502, %v499
    %v788 = vpack.c.b16 %v503, %v500
    %v789 = vpack.c.b16 %v504, %v501
    %v790 = vpack.c.b16 %v508, %v505
    %v791 = vpack.c.b16 %v509, %v506
    %v792 = vpack.c.b16 %v510, %v507
    %v793 = vpack.c.b16 %v514, %v511
    %v794 = vpack.c.b16 %v515, %v512
    %v795 = vpack.c.b16 %v516, %v513
    %v796 = vpack.c.b16 %v520, %v517
    %v797 = vpack.c.b16 %v521, %v518
    %v798 = vpack.c.b16 %v522, %v519
    %v799 = vpack.c.b16 %v526, %v523
    %v800 = vpack.c.b16 %v527, %v524
    %v801 = vpack.c.b16 %v528, %v525
    %v802 = vpack.c.b16 %v532, %v529
    %v803 = vpack.c.b16 %v533, %v530
    %v804 = vpack.c.b16 %v534, %v531
    %v805 = vpack.c.b16 %v538, %v535
    %v806 = vpack.c.b16 %v539, %v536
    %v807 = vpack.c.b16 %v540, %v537
    %v808 = vpack.c.b16 %v544, %v541
    %v809 = vpack.c.b16 %v545, %v542
    %v810 = vpack.c.b16 %v546, %v543
    %v811 = vpack.c.b16 %v550, %v547
    %v812 = vpack.c.b16 %v551, %v548
    %v813 = vpack.c.b16 %v552, %v549
    %v814 = vpack.c.b16 %v556, %v553
    %v815 = vpack.c.b16 %v557, %v554
    %v816 = vpack.c.b16 %v558, %v555
    %v817 = vpack.c.b16 %v562, %v559
    %v818 = vpack.c.b16 %v563, %v560
    %v819 = vpack.c.b16 %v564, %v561
    %v820 = vpack.c.b16 %v568, %v565
    %v821 = vpack.c.b16 %v569, %v566
    %v822 = vpack.c.b16 %v570, %v567
    %v823 = vpack.c.b16 %v574, %v571
    %v824 = vpack.c.b16 %v575, %v572
    %v825 = vpack.c.b16 %v576, %v573
    %v826 = vpack.c.b16 %v580, %v577
    %v827 = vpack.c.b16 %v581, %v578
    %v828 = vpack.c.b16 %v582, %v579
    %v829 = vpack.c.b16 %v586, %v583
    %v830 = vpack.c.b16 %v587, %v584
    %v831 = vpack.c.b16 %v588, %v585
    %v832 = vpack.c.b16 %v592, %v589
    %v833 = vpack.c.b16 %v593, %v590
    %v834 = vpack.c.b16 %v594, %v591
    %v835 = vpack.c.b16 %v598, %v595
    %v836 = vpack.c.b16 %v599, %v596
    %v837 = vpack.c.b16 %v600, %v597
    %v838 = vpack.c.b16 %v604, %v601
    %v839 = vpack.c.b16 %v605, %v602
    %v840 = vpack.c.b16 %v606, %v603
    %v841 = vpack.c.b16 %v610, %v607
    %v842 = vpack.c.b16 %v611, %v608
    %v843 = vpack.c.b16 %v612, %v609
    %v844 = vpack.c.b16 %v616, %v613
    %v845 = vpack.c.b16 %v617, %v614
    %v846 = vpack.c.b16 %v618, %v615
    %v847 = vpack.c.b16 %v622, %v619
    %v848 = vpack.c.b16 %v623, %v620
    %v849 = vpack.c.b16 %v624, %v621
    %v850 = vpack.c.b16 %v628, %v625
    %v851 = vpack.c.b16 %v629, %v626
    %v852 = vpack.c.b16 %v630, %v627
    %v853 = vpack.c.b16 %v634, %v631
    %v854 = vpack.c.b16 %v635, %v632
    %v855 = vpack.c.b16 %v636, %v633
    %v856 = vpack.c.b16 %v640, %v637
    %v857 = vpack.c.b16 %v641, %v638
    %v858 = vpack.c.b16 %v642, %v639
    %v859 = vpack.c.b16 %v646, %v643
    %v860 = vpack.c.b16 %v647, %v644
    %v861 = vpack.c.b16 %v648, %v645
    %v862 = vpack.c.b16 %v652, %v649
    %v863 = vpack.c.b16 %v653, %v650
    %v864 = vpack.c.b16 %v654, %v651
    %v865 = vpack.c.b16 %v658, %v655
    %v866 = vpack.c.b16 %v659, %v656
    %v867 = vpack.c.b16 %v660, %v657
    %v868 = vpack.c.b16 %v664, %v661
    %v869 = vpack.c.b16 %v665, %v662
    %v870 = vpack.c.b16 %v666, %v663
    %v871 = vpack.c.b16 %v670, %v667
    %v872 = vpack.c.b16 %v671, %v668
    %v873 = vpack.c.b16 %v672, %v669
    %v874 = vpack.c.b16 %v676, %v673
    %v875 = vpack.c.b16 %v677, %v674
    %v876 = vpack.c.b16 %v678, %v675
    %v877 = vpack.c.b16 %v682, %v679
    %v878 = vpack.c.b16 %v683, %v680
    %v879 = vpack.c.b16 %v684, %v681
    %v880 = vpack.c.b16 %v688, %v685
    %v881 = vpack.c.b16 %v689, %v686
    %v882 = vpack.c.b16 %v690, %v687
    %v883 = vpack.c.b16 %v694, %v691
    %v884 = vpack.c.b16 %v695, %v692
    %v885 = vpack.c.b16 %v696, %v693
    %v886 = vpack.c.b16 %v700, %v697
    %v887 = vpack.c.b16 %v701, %v698
    %v888 = vpack.c.b16 %v702, %v699
    %v889 = vpack.c.b16 %v706, %v703
    %v890 = vpack.c.b16 %v707, %v704
    %v891 = vpack.c.b16 %v708, %v705
    %v892 = vpack.c.b16 %v712, %v709
    %v893 = vpack.c.b16 %v713, %v710
    %v894 = vpack.c.b16 %v714, %v711
    %v895 = vpack.c.b16 %v718, %v715
    %v896 = vpack.c.b16 %v719, %v716
    %v897 = vpack.c.b16 %v720, %v717
    %v898 = vpack.c.b16 %v724, %v721
    %v899 = vpack.c.b16 %v725, %v722
    %v900 = vpack.c.b16 %v726, %v723
    %v901 = vpack.c.b16 %v730, %v727
    %v902 = vpack.c.b16 %v731, %v728
    %v903 = vpack.c.b16 %v732, %v729
    %v904 = vpack.c.b16 %v736, %v733
    %v905 = vpack.c.b16 %v737, %v734
    %v906 = vpack.c.b16 %v738, %v735
    %v907 = vpack.c.b16 %v742, %v739
    %v908 = vpack.c.b16 %v743, %v740
    %v909 = vpack.c.b16 %v744, %v741
    %v910 = vpack.c.b16 %v748, %v745
    %v911 = vpack.c.b16 %v749, %v746
    %v912 = vpack.c.b16 %v750, %v747
    %v913 = vpack.c.b16 %v754, %v751
    %v914 = vpack.c.b16 %v755, %v752
    %v915 = vpack.c.b16 %v756, %v753
    %v916 = vpack.c.b16 %v760, %v757
    %v917 = vpack.c.b16 %v761, %v758
    %v918 = vpack.c.b16 %v762, %v759
    %v919 = vpack.c.b16 %v766, %v763
    %v920 = vpack.c.b16 %v767, %v764
    %v921 = vpack.c.b16 %v768, %v765
    %v922 = vpack.c.b16 %v772, %v769
    %v923 = vpack.c.b16 %v773, %v770
    %v924 = vpack.c.b16 %v774, %v771
    %v925 = vpack.c.b16 %v778, %v775
    %v926 = vpack.c.b16 %v779, %v776
    %v927 = vpack.c.b16 %v780, %v777
    %vm1075 = vcmask 130048
    %v1077 = vsel %vm1075, %v94, 0
    %1079 = vmatprep.subr.bf16.mxu0 %v782
    %1080 = vmatpush1.bf16.msra.mxu0 %v781
    %1081 = vmatprep.subr.bf16.mxu0 %v785
    %1082 = vmatpush1.bf16.msra.mxu0 %v784
    %1083 = vmatprep.subr.bf16.mxu0 %v788
    %1084 = vmatpush1.bf16.msra.mxu0 %v787
    %1085 = vmatprep.subr.bf16.mxu0 %v791
    %1086 = vmatpush1.bf16.msra.mxu0 %v790
    %1087 = vmatprep.subr.bf16.mxu0 %v794
    %1088 = vmatpush1.bf16.msra.mxu0 %v793
    %1089 = vmatprep.subr.bf16.mxu0 %v797
    %1090 = vmatpush1.bf16.msra.mxu0 %v796
    %1091 = vmatprep.subr.bf16.mxu0 %v800
    %1092 = vmatpush1.bf16.msra.mxu0 %v799
    %1093 = vmatprep.subr.bf16.mxu0 %v803
    %1094 = vmatpush1.bf16.msra.mxu0 %v802
    %1095 = vmatprep.subr.bf16.mxu0 %v806
    %1096 = vmatpush1.bf16.msra.mxu0 %v805
    %1097 = vmatprep.subr.bf16.mxu0 %v809
    %1098 = vmatpush1.bf16.msra.mxu0 %v808
    %1099 = vmatprep.subr.bf16.mxu0 %v812
    %1100 = vmatpush1.bf16.msra.mxu0 %v811
    %1101 = vmatprep.subr.bf16.mxu0 %v815
    %1102 = vmatpush1.bf16.msra.mxu0 %v814
    %1103 = vmatprep.subr.bf16.mxu0 %v818
    %1104 = vmatpush1.bf16.msra.mxu0 %v817
    %1105 = vmatprep.subr.bf16.mxu0 %v821
    %1106 = vmatpush1.bf16.msra.mxu0 %v820
    %1107 = vmatprep.subr.bf16.mxu0 %v824
    %1108 = vmatpush1.bf16.msra.mxu0 %v823
    %1109 = vmatprep.subr.bf16.mxu0 %v827
    %1110 = vmatpush1.bf16.msra.mxu0 %v826
    %1111 = vmatprep.mubr.bf16.mxu0 %v89
    %1112 = vmatmul.mubr.bf16.gmra.mrb[0].mxu0 %v88
    %v1113 = vpop.f32.mrb[0].mxu0
    %v1114 = vadd.f32 0.0, %v1113
    %v1115 = vpop.f32.mrb[0].mxu0
    %v1116 = vadd.f32 0.0, %v1115
    %v1117 = vpop.f32.mrb[0].mxu0
    %v1118 = vadd.f32 0.0, %v1117
    %v1119 = vpop.f32.mrb[0].mxu0
    %v1120 = vadd.f32 0.0, %v1119
    %1121 = vdwg.mxu0
    %1122 = vmatprep.subr.bf16.mxu0 %v830
    %1123 = vmatpush1.bf16.msra.mxu0 %v829
    %1124 = vmatprep.subr.bf16.mxu0 %v833
    %1125 = vmatpush1.bf16.msra.mxu0 %v832
    %1126 = vmatprep.subr.bf16.mxu0 %v836
    %1127 = vmatpush1.bf16.msra.mxu0 %v835
    %1128 = vmatprep.subr.bf16.mxu0 %v839
    %1129 = vmatpush1.bf16.msra.mxu0 %v838
    %1130 = vmatprep.subr.bf16.mxu0 %v842
    %1131 = vmatpush1.bf16.msra.mxu0 %v841
    %1132 = vmatprep.subr.bf16.mxu0 %v845
    %1133 = vmatpush1.bf16.msra.mxu0 %v844
    %1134 = vmatprep.subr.bf16.mxu0 %v848
    %1135 = vmatpush1.bf16.msra.mxu0 %v847
    %1136 = vmatprep.subr.bf16.mxu0 %v851
    %1137 = vmatpush1.bf16.msra.mxu0 %v850
    %1138 = vmatprep.subr.bf16.mxu0 %v854
    %1139 = vmatpush1.bf16.msra.mxu0 %v853
    %1140 = vmatprep.subr.bf16.mxu0 %v857
    %1141 = vmatpush1.bf16.msra.mxu0 %v856
    %1142 = vmatprep.subr.bf16.mxu0 %v860
    %1143 = vmatpush1.bf16.msra.mxu0 %v859
    %1144 = vmatprep.subr.bf16.mxu0 %v863
    %1145 = vmatpush1.bf16.msra.mxu0 %v862
    %1146 = vmatprep.subr.bf16.mxu0 %v866
    %1147 = vmatpush1.bf16.msra.mxu0 %v865
    %1148 = vmatprep.subr.bf16.mxu0 %v869
    %1149 = vmatpush1.bf16.msra.mxu0 %v868
    %1150 = vmatprep.subr.bf16.mxu0 %v872
    %1151 = vmatpush1.bf16.msra.mxu0 %v871
    %1152 = vmatprep.subr.bf16.mxu0 %v875
    %1153 = vmatpush1.bf16.msra.mxu0 %v874
    %1154 = vmatprep.mubr.bf16.mxu0 %v91
    %1155 = vmatmul.mubr.bf16.gmra.mrb[0].mxu0 %v90
    %v1156 = vpop.f32.mrb[0].mxu0
    %v1157 = vadd.f32 %v1114, %v1156
    %v1158 = vpop.f32.mrb[0].mxu0
    %v1159 = vadd.f32 %v1116, %v1158
    %v1160 = vpop.f32.mrb[0].mxu0
    %v1161 = vadd.f32 %v1118, %v1160
    %v1162 = vpop.f32.mrb[0].mxu0
    %v1163 = vadd.f32 %v1120, %v1162
    %1164 = vdwg.mxu0
    %1165 = vmatprep.subr.bf16.mxu0 %v878
    %1166 = vmatpush1.bf16.msra.mxu0 %v877
    %1167 = vmatprep.subr.bf16.mxu0 %v881
    %1168 = vmatpush1.bf16.msra.mxu0 %v880
    %1169 = vmatprep.subr.bf16.mxu0 %v884
    %1170 = vmatpush1.bf16.msra.mxu0 %v883
    %1171 = vmatprep.subr.bf16.mxu0 %v887
    %1172 = vmatpush1.bf16.msra.mxu0 %v886
    %1173 = vmatprep.subr.bf16.mxu0 %v890
    %1174 = vmatpush1.bf16.msra.mxu0 %v889
    %1175 = vmatprep.subr.bf16.mxu0 %v893
    %1176 = vmatpush1.bf16.msra.mxu0 %v892
    %1177 = vmatprep.subr.bf16.mxu0 %v896
    %1178 = vmatpush1.bf16.msra.mxu0 %v895
    %1179 = vmatprep.subr.bf16.mxu0 %v899
    %1180 = vmatpush1.bf16.msra.mxu0 %v898
    %1181 = vmatprep.subr.bf16.mxu0 %v902
    %1182 = vmatpush1.bf16.msra.mxu0 %v901
    %1183 = vmatprep.subr.bf16.mxu0 %v905
    %1184 = vmatpush1.bf16.msra.mxu0 %v904
    %1185 = vmatprep.subr.bf16.mxu0 %v908
    %1186 = vmatpush1.bf16.msra.mxu0 %v907
    %1187 = vmatprep.subr.bf16.mxu0 %v911
    %1188 = vmatpush1.bf16.msra.mxu0 %v910
    %1189 = vmatprep.subr.bf16.mxu0 %v914
    %1190 = vmatpush1.bf16.msra.mxu0 %v913
    %1191 = vmatprep.subr.bf16.mxu0 %v917
    %1192 = vmatpush1.bf16.msra.mxu0 %v916
    %1193 = vmatprep.subr.bf16.mxu0 %v920
    %1194 = vmatpush1.bf16.msra.mxu0 %v919
    %1195 = vmatprep.subr.bf16.mxu0 %v923
    %1196 = vmatpush1.bf16.msra.mxu0 %v922
    %1197 = vmatprep.mubr.bf16.mxu0 %v93
    %1198 = vmatmul.mubr.bf16.gmra.mrb[0].mxu0 %v92
    %v1199 = vpop.f32.mrb[0].mxu0
    %v1200 = vadd.f32 %v1157, %v1199
    %v1201 = vpop.f32.mrb[0].mxu0
    %v1202 = vadd.f32 %v1159, %v1201
    %v1203 = vpop.f32.mrb[0].mxu0
    %v1204 = vadd.f32 %v1161, %v1203
    %v1205 = vpop.f32.mrb[0].mxu0
    %v1206 = vadd.f32 %v1163, %v1205
    %1207 = vdwg.mxu0
    %1208 = vmatprep.subr.bf16.mxu0 %v926
    %1209 = vmatpush1.bf16.msra.mxu0 %v925
    %1210 = vmatprep.subr.bf16.mxu0 0
    %1211 = vmatpush1.bf16.msra.mxu0 0
    %1212 = vmatprep.subr.bf16.mxu0 0
    %1213 = vmatpush1.bf16.msra.mxu0 0
    %1214 = vmatprep.subr.bf16.mxu0 0
    %1215 = vmatpush1.bf16.msra.mxu0 0
    %1216 = vmatprep.subr.bf16.mxu0 0
    %1217 = vmatpush1.bf16.msra.mxu0 0
    %1218 = vmatprep.subr.bf16.mxu0 0
    %1219 = vmatpush1.bf16.msra.mxu0 0
    %1220 = vmatprep.subr.bf16.mxu0 0
    %1221 = vmatpush1.bf16.msra.mxu0 0
    %1222 = vmatprep.subr.bf16.mxu0 0
    %1223 = vmatpush1.bf16.msra.mxu0 0
    %1224 = vmatprep.subr.bf16.mxu0 0
    %1225 = vmatpush1.bf16.msra.mxu0 0
    %1226 = vmatprep.subr.bf16.mxu0 0
    %1227 = vmatpush1.bf16.msra.mxu0 0
    %1228 = vmatprep.subr.bf16.mxu0 0
    %1229 = vmatpush1.bf16.msra.mxu0 0
    %1230 = vmatprep.subr.bf16.mxu0 0
    %1231 = vmatpush1.bf16.msra.mxu0 0
    %1232 = vmatprep.subr.bf16.mxu0 0
    %1233 = vmatpush1.bf16.msra.mxu0 0
    %1234 = vmatprep.subr.bf16.mxu0 0
    %1235 = vmatpush1.bf16.msra.mxu0 0
    %1236 = vmatprep.subr.bf16.mxu0 0
    %1237 = vmatpush1.bf16.msra.mxu0 0
    %1238 = vmatprep.subr.bf16.mxu0 0
    %1239 = vmatpush1.bf16.msra.mxu0 0
    %1240 = vmatprep.mubr.bf16.mxu0 0
    %1241 = vmatmul.mubr.bf16.gmra.mrb[0].mxu0 %v1077
    %v1242 = vpop.f32.mrb[0].mxu0
    %v1243 = vadd.f32 %v1200, %v1242
    %v1244 = vpop.f32.mrb[0].mxu0
    %v1245 = vadd.f32 %v1202, %v1244
    %v1246 = vpop.f32.mrb[0].mxu0
    %v1247 = vadd.f32 %v1204, %v1246
    %v1248 = vpop.f32.mrb[0].mxu0
    %v1249 = vadd.f32 %v1206, %v1248
    %1250 = vdwg.mxu0
    %1251 = vmatprep.subr.bf16.mxu0 0
    %1252 = vmatpush1.bf16.msra.mxu0 %v783
    %1253 = vmatprep.subr.bf16.mxu0 0
    %1254 = vmatpush1.bf16.msra.mxu0 %v786
    %1255 = vmatprep.subr.bf16.mxu0 0
    %1256 = vmatpush1.bf16.msra.mxu0 %v789
    %1257 = vmatprep.subr.bf16.mxu0 0
    %1258 = vmatpush1.bf16.msra.mxu0 %v792
    %1259 = vmatprep.subr.bf16.mxu0 0
    %1260 = vmatpush1.bf16.msra.mxu0 %v795
    %1261 = vmatprep.subr.bf16.mxu0 0
    %1262 = vmatpush1.bf16.msra.mxu0 %v798
    %1263 = vmatprep.subr.bf16.mxu0 0
    %1264 = vmatpush1.bf16.msra.mxu0 %v801
    %1265 = vmatprep.subr.bf16.mxu0 0
    %1266 = vmatpush1.bf16.msra.mxu0 %v804
    %1267 = vmatprep.subr.bf16.mxu0 0
    %1268 = vmatpush1.bf16.msra.mxu0 %v807
    %1269 = vmatprep.subr.bf16.mxu0 0
    %1270 = vmatpush1.bf16.msra.mxu0 %v810
    %1271 = vmatprep.subr.bf16.mxu0 0
    %1272 = vmatpush1.bf16.msra.mxu0 %v813
    %1273 = vmatprep.subr.bf16.mxu0 0
    %1274 = vmatpush1.bf16.msra.mxu0 %v816
    %1275 = vmatprep.subr.bf16.mxu0 0
    %1276 = vmatpush1.bf16.msra.mxu0 %v819
    %1277 = vmatprep.subr.bf16.mxu0 0
    %1278 = vmatpush1.bf16.msra.mxu0 %v822
    %1279 = vmatprep.subr.bf16.mxu0 0
    %1280 = vmatpush1.bf16.msra.mxu0 %v825
    %1281 = vmatprep.subr.bf16.mxu0 0
    %1282 = vmatpush1.bf16.msra.mxu0 %v828
    %1283 = vmatprep.mubr.bf16.mxu0 %v89
    %1284 = vmatmul.mubr.bf16.gmra.mrb[0].mxu0 %v88
    %v1285 = vpop.f32.mrb[0].mxu0
    %v1286 = vadd.f32 0.0, %v1285
    %v1287 = vpop.f32.mrb[0].mxu0
    %v1288 = vpop.f32.mrb[0].mxu0
    %v1289 = vadd.f32 0.0, %v1288
    %v1290 = vpop.f32.mrb[0].mxu0
    %1291 = vdwg.mxu0
    %1292 = vmatprep.subr.bf16.mxu0 0
    %1293 = vmatpush1.bf16.msra.mxu0 %v831
    %1294 = vmatprep.subr.bf16.mxu0 0
    %1295 = vmatpush1.bf16.msra.mxu0 %v834
    %1296 = vmatprep.subr.bf16.mxu0 0
    %1297 = vmatpush1.bf16.msra.mxu0 %v837
    %1298 = vmatprep.subr.bf16.mxu0 0
    %1299 = vmatpush1.bf16.msra.mxu0 %v840
    %1300 = vmatprep.subr.bf16.mxu0 0
    %1301 = vmatpush1.bf16.msra.mxu0 %v843
    %1302 = vmatprep.subr.bf16.mxu0 0
    %1303 = vmatpush1.bf16.msra.mxu0 %v846
    %1304 = vmatprep.subr.bf16.mxu0 0
    %1305 = vmatpush1.bf16.msra.mxu0 %v849
    %1306 = vmatprep.subr.bf16.mxu0 0
    %1307 = vmatpush1.bf16.msra.mxu0 %v852
    %1308 = vmatprep.subr.bf16.mxu0 0
    %1309 = vmatpush1.bf16.msra.mxu0 %v855
    %1310 = vmatprep.subr.bf16.mxu0 0
    %1311 = vmatpush1.bf16.msra.mxu0 %v858
    %1312 = vmatprep.subr.bf16.mxu0 0
    %1313 = vmatpush1.bf16.msra.mxu0 %v861
    %1314 = vmatprep.subr.bf16.mxu0 0
    %1315 = vmatpush1.bf16.msra.mxu0 %v864
    %1316 = vmatprep.subr.bf16.mxu0 0
    %1317 = vmatpush1.bf16.msra.mxu0 %v867
    %1318 = vmatprep.subr.bf16.mxu0 0
    %1319 = vmatpush1.bf16.msra.mxu0 %v870
    %1320 = vmatprep.subr.bf16.mxu0 0
    %1321 = vmatpush1.bf16.msra.mxu0 %v873
    %1322 = vmatprep.subr.bf16.mxu0 0
    %1323 = vmatpush1.bf16.msra.mxu0 %v876
    %1324 = vmatprep.mubr.bf16.mxu0 %v91
    %1325 = vmatmul.mubr.bf16.gmra.mrb[0].mxu0 %v90
    %v1326 = vpop.f32.mrb[0].mxu0
    %v1327 = vadd.f32 %v1286, %v1326
    %v1328 = vpop.f32.mrb[0].mxu0
    %v1329 = vpop.f32.mrb[0].mxu0
    %v1330 = vadd.f32 %v1289, %v1329
    %v1331 = vpop.f32.mrb[0].mxu0
    %1332 = vdwg.mxu0
    %1333 = vmatprep.subr.bf16.mxu0 0
    %1334 = vmatpush1.bf16.msra.mxu0 %v879
    %1335 = vmatprep.subr.bf16.mxu0 0
    %1336 = vmatpush1.bf16.msra.mxu0 %v882
    %1337 = vmatprep.subr.bf16.mxu0 0
    %1338 = vmatpush1.bf16.msra.mxu0 %v885
    %1339 = vmatprep.subr.bf16.mxu0 0
    %1340 = vmatpush1.bf16.msra.mxu0 %v888
    %1341 = vmatprep.subr.bf16.mxu0 0
    %1342 = vmatpush1.bf16.msra.mxu0 %v891
    %1343 = vmatprep.subr.bf16.mxu0 0
    %1344 = vmatpush1.bf16.msra.mxu0 %v894
    %1345 = vmatprep.subr.bf16.mxu0 0
    %1346 = vmatpush1.bf16.msra.mxu0 %v897
    %1347 = vmatprep.subr.bf16.mxu0 0
    %1348 = vmatpush1.bf16.msra.mxu0 %v900
    %1349 = vmatprep.subr.bf16.mxu0 0
    %1350 = vmatpush1.bf16.msra.mxu0 %v903
    %1351 = vmatprep.subr.bf16.mxu0 0
    %1352 = vmatpush1.bf16.msra.mxu0 %v906
    %1353 = vmatprep.subr.bf16.mxu0 0
    %1354 = vmatpush1.bf16.msra.mxu0 %v909
    %1355 = vmatprep.subr.bf16.mxu0 0
    %1356 = vmatpush1.bf16.msra.mxu0 %v912
    %1357 = vmatprep.subr.bf16.mxu0 0
    %1358 = vmatpush1.bf16.msra.mxu0 %v915
    %1359 = vmatprep.subr.bf16.mxu0 0
    %1360 = vmatpush1.bf16.msra.mxu0 %v918
    %1361 = vmatprep.subr.bf16.mxu0 0
    %1362 = vmatpush1.bf16.msra.mxu0 %v921
    %1363 = vmatprep.subr.bf16.mxu0 0
    %1364 = vmatpush1.bf16.msra.mxu0 %v924
    %1365 = vmatprep.mubr.bf16.mxu0 %v93
    %1366 = vmatmul.mubr.bf16.gmra.mrb[0].mxu0 %v92
    %v1367 = vpop.f32.mrb[0].mxu0
    %v1368 = vadd.f32 %v1327, %v1367
    %v1369 = vpop.f32.mrb[0].mxu0
    %v1370 = vpop.f32.mrb[0].mxu0
    %v1371 = vadd.f32 %v1330, %v1370
    %v1372 = vpop.f32.mrb[0].mxu0
    %1373 = vdwg.mxu0
    %1374 = vmatprep.subr.bf16.mxu0 0
    %1375 = vmatpush1.bf16.msra.mxu0 %v927
    %1376 = vmatprep.subr.bf16.mxu0 0
    %1377 = vmatpush1.bf16.msra.mxu0 0
    %1378 = vmatprep.subr.bf16.mxu0 0
    %1379 = vmatpush1.bf16.msra.mxu0 0
    %1380 = vmatprep.subr.bf16.mxu0 0
    %1381 = vmatpush1.bf16.msra.mxu0 0
    %1382 = vmatprep.subr.bf16.mxu0 0
    %1383 = vmatpush1.bf16.msra.mxu0 0
    %1384 = vmatprep.subr.bf16.mxu0 0
    %1385 = vmatpush1.bf16.msra.mxu0 0
    %1386 = vmatprep.subr.bf16.mxu0 0
    %1387 = vmatpush1.bf16.msra.mxu0 0
    %1388 = vmatprep.subr.bf16.mxu0 0
    %1389 = vmatpush1.bf16.msra.mxu0 0
    %1390 = vmatprep.subr.bf16.mxu0 0
    %1391 = vmatpush1.bf16.msra.mxu0 0
    %1392 = vmatprep.subr.bf16.mxu0 0
    %1393 = vmatpush1.bf16.msra.mxu0 0
    %1394 = vmatprep.subr.bf16.mxu0 0
    %1395 = vmatpush1.bf16.msra.mxu0 0
    %1396 = vmatprep.subr.bf16.mxu0 0
    %1397 = vmatpush1.bf16.msra.mxu0 0
    %1398 = vmatprep.subr.bf16.mxu0 0
    %1399 = vmatpush1.bf16.msra.mxu0 0
    %1400 = vmatprep.subr.bf16.mxu0 0
    %1401 = vmatpush1.bf16.msra.mxu0 0
    %1402 = vmatprep.subr.bf16.mxu0 0
    %1403 = vmatpush1.bf16.msra.mxu0 0
    %1404 = vmatprep.subr.bf16.mxu0 0
    %1405 = vmatpush1.bf16.msra.mxu0 0
    %1406 = vmatprep.mubr.bf16.mxu0 0
    %1407 = vmatmul.mubr.bf16.gmra.mrb[0].mxu0 %v1077
    %v1408 = vpop.f32.mrb[0].mxu0
    %v1409 = vadd.f32 %v1368, %v1408
    %v1410 = vpop.f32.mrb[0].mxu0
    %v1411 = vpop.f32.mrb[0].mxu0
    %v1412 = vadd.f32 %v1371, %v1411
    %v1413 = vpop.f32.mrb[0].mxu0
    %1414 = vdwg.mxu0
    %v1415 = vmax.f32 %v1243, 0.0
    %v1416 = vmax.f32 %v1245, 0.0
    %v1417 = vmax.f32 %v1409, 0.0
    %v1418 = vmax.f32 %v1247, 0.0
    %v1419 = vmax.f32 %v1249, 0.0
    %v1420 = vmax.f32 %v1412, 0.0
    %v1421 = vpack.c.bf16 %v1418, %v1415
    %v1422 = vpack.c.bf16 %v1419, %v1416
    %v1423 = vpack.c.bf16 %v1420, %v1417
    %v1424 = vld [vmem:[#allocation7] sm:$0xf]
    %v1425 = vld [vmem:[#allocation7 + $0x4] sm:$0xf]
    %v1426 = vld [vmem:[#allocation7 + $0x8] sm:$0xf]
    %v1427 = vld [vmem:[#allocation7 + $0xc] sm:$0xf]
    %v1428 = vld [vmem:[#allocation7 + $0x10] sm:$0xf]
    %v1429 = vld [vmem:[#allocation7 + $0x14] sm:$0xf]
    %v1430 = vld [vmem:[#allocation7 + $0x18] sm:$0xf]
    %v1431 = vld [vmem:[#allocation7 + $0x1c] sm:$0xf]
    %v1432 = vld [vmem:[#allocation7 + $0x20] sm:$0xf]
    %v1433 = vld [vmem:[#allocation7 + $0x24] sm:$0xf]
    %v1434 = vld [vmem:[#allocation7 + $0x28] sm:$0xf]
    %v1435 = vld [vmem:[#allocation7 + $0x2c] sm:$0xf]
    %v1436 = vld [vmem:[#allocation7 + $0x30] sm:$0xf]
    %v1437 = vld [vmem:[#allocation7 + $0x34] sm:$0xf]
    %v1438 = vld [vmem:[#allocation7 + $0x38] sm:$0xf]
    %v1439 = vld [vmem:[#allocation7 + $0x3c] sm:$0xf]
    %v1440 = vld [vmem:[#allocation7 + $0x40] sm:$0xf]
    %v1441 = vld [vmem:[#allocation7 + $0x44] sm:$0xf]
    %v1442 = vld [vmem:[#allocation7 + $0x48] sm:$0xf]
    %v1443 = vld [vmem:[#allocation7 + $0x4c] sm:$0xf]
    %v1444 = vld [vmem:[#allocation7 + $0x50] sm:$0xf]
    %v1445 = vld [vmem:[#allocation7 + $0x54] sm:$0xf]
    %v1446 = vld [vmem:[#allocation7 + $0x58] sm:$0xf]
    %v1447 = vld [vmem:[#allocation7 + $0x5c] sm:$0xf]
    %v1448 = vld [vmem:[#allocation7 + $0x60] sm:$0xf]
    %v1449 = vld [vmem:[#allocation7 + $0x64] sm:$0xf]
    %v1450 = vld [vmem:[#allocation7 + $0x68] sm:$0xf]
    %v1451 = vld [vmem:[#allocation7 + $0x6c] sm:$0xf]
    %v1452 = vld [vmem:[#allocation7 + $0x70] sm:$0xf]
    %v1453 = vld [vmem:[#allocation7 + $0x74] sm:$0xf]
    %v1454 = vld [vmem:[#allocation7 + $0x78] sm:$0xf]
    %v1455 = vld [vmem:[#allocation7 + $0x7c] sm:$0xf]
    %v1456 = vld [vmem:[#allocation7 + $0x80] sm:$0xf]
    %v1457 = vld [vmem:[#allocation7 + $0x84] sm:$0xf]
    %v1458 = vld [vmem:[#allocation7 + $0x88] sm:$0xf]
    %v1459 = vld [vmem:[#allocation7 + $0x8c] sm:$0xf]
    %v1460 = vld [vmem:[#allocation7 + $0x90] sm:$0xf]
    %v1461 = vld [vmem:[#allocation7 + $0x94] sm:$0xf]
    %v1462 = vld [vmem:[#allocation7 + $0x98] sm:$0xf]
    %v1463 = vld [vmem:[#allocation7 + $0x9c] sm:$0xf]
    %v1464 = vld [vmem:[#allocation7 + $0xa0] sm:$0xf]
    %v1465 = vld [vmem:[#allocation7 + $0xa4] sm:$0xf]
    %v1466 = vld [vmem:[#allocation7 + $0xa8] sm:$0xf]
    %v1467 = vld [vmem:[#allocation7 + $0xac] sm:$0xf]
    %v1468 = vld [vmem:[#allocation7 + $0xb0] sm:$0xf]
    %v1469 = vld [vmem:[#allocation7 + $0xb4] sm:$0xf]
    %v1470 = vld [vmem:[#allocation7 + $0xb8] sm:$0xf]
    %v1471 = vld [vmem:[#allocation7 + $0xbc] sm:$0xf]
    %v1520 = vunpack.c.l.b16 %v1424
    %v1521 = vunpack.c.l.b16 %v1425
    %v1522 = vunpack.c.l.b16 %v1426
    %v1523 = vunpack.c.l.b16 %v1427
    %v1524 = vunpack.c.l.b16 %v1428
    %v1525 = vunpack.c.l.b16 %v1429
    %v1526 = vunpack.c.l.b16 %v1430
    %v1527 = vunpack.c.l.b16 %v1431
    %v1528 = vunpack.c.l.b16 %v1432
    %v1529 = vunpack.c.l.b16 %v1433
    %v1530 = vunpack.c.l.b16 %v1434
    %v1531 = vunpack.c.l.b16 %v1435
    %v1532 = vunpack.c.l.b16 %v1436
    %v1533 = vunpack.c.l.b16 %v1437
    %v1534 = vunpack.c.l.b16 %v1438
    %v1535 = vunpack.c.l.b16 %v1439
    %v1536 = vunpack.c.l.b16 %v1440
    %v1537 = vunpack.c.l.b16 %v1441
    %v1538 = vunpack.c.l.b16 %v1442
    %v1539 = vunpack.c.l.b16 %v1443
    %v1540 = vunpack.c.l.b16 %v1444
    %v1541 = vunpack.c.l.b16 %v1445
    %v1542 = vunpack.c.l.b16 %v1446
    %v1543 = vunpack.c.l.b16 %v1447
    %v1544 = vunpack.c.l.b16 %v1448
    %v1545 = vunpack.c.l.b16 %v1449
    %v1546 = vunpack.c.l.b16 %v1450
    %v1547 = vunpack.c.l.b16 %v1451
    %v1548 = vunpack.c.l.b16 %v1452
    %v1549 = vunpack.c.l.b16 %v1453
    %v1550 = vunpack.c.l.b16 %v1454
    %v1551 = vunpack.c.l.b16 %v1455
    %v1552 = vunpack.c.l.b16 %v1456
    %v1553 = vunpack.c.l.b16 %v1457
    %v1554 = vunpack.c.l.b16 %v1458
    %v1555 = vunpack.c.l.b16 %v1459
    %v1556 = vunpack.c.l.b16 %v1460
    %v1557 = vunpack.c.l.b16 %v1461
    %v1558 = vunpack.c.l.b16 %v1462
    %v1559 = vunpack.c.l.b16 %v1463
    %v1560 = vunpack.c.l.b16 %v1464
    %v1561 = vunpack.c.l.b16 %v1465
    %v1562 = vunpack.c.l.b16 %v1466
    %v1563 = vunpack.c.l.b16 %v1467
    %v1564 = vunpack.c.l.b16 %v1468
    %v1565 = vunpack.c.l.b16 %v1469
    %v1566 = vunpack.c.l.b16 %v1470
    %v1567 = vunpack.c.l.b16 %v1471
    %v1568 = vpack.c.b16 %v1521, %v1520
    %v1569 = vpack.c.b16 %v1523, %v1522
    %v1570 = vpack.c.b16 %v1525, %v1524
    %v1571 = vpack.c.b16 %v1527, %v1526
    %v1572 = vpack.c.b16 %v1529, %v1528
    %v1573 = vpack.c.b16 %v1531, %v1530
    %v1574 = vpack.c.b16 %v1533, %v1532
    %v1575 = vpack.c.b16 %v1535, %v1534
    %v1576 = vpack.c.b16 %v1537, %v1536
    %v1577 = vpack.c.b16 %v1539, %v1538
    %v1578 = vpack.c.b16 %v1541, %v1540
    %v1579 = vpack.c.b16 %v1543, %v1542
    %v1580 = vpack.c.b16 %v1545, %v1544
    %v1581 = vpack.c.b16 %v1547, %v1546
    %v1582 = vpack.c.b16 %v1549, %v1548
    %v1583 = vpack.c.b16 %v1551, %v1550
    %v1584 = vpack.c.b16 %v1553, %v1552
    %v1585 = vpack.c.b16 %v1555, %v1554
    %v1586 = vpack.c.b16 %v1557, %v1556
    %v1587 = vpack.c.b16 %v1559, %v1558
    %v1588 = vpack.c.b16 %v1561, %v1560
    %v1589 = vpack.c.b16 %v1563, %v1562
    %v1590 = vpack.c.b16 %v1565, %v1564
    %v1591 = vpack.c.b16 %v1567, %v1566
    %1616 = vmatprep.subr.bf16.mxu0 0
    %1617 = vmatpush1.bf16.msra.mxu0 %v1568
    %1618 = vmatprep.subr.bf16.mxu0 0
    %1619 = vmatpush1.bf16.msra.mxu0 %v1569
    %1620 = vmatprep.subr.bf16.mxu0 0
    %1621 = vmatpush1.bf16.msra.mxu0 %v1570
    %1622 = vmatprep.subr.bf16.mxu0 0
    %1623 = vmatpush1.bf16.msra.mxu0 %v1571
    %1624 = vmatprep.subr.bf16.mxu0 0
    %1625 = vmatpush1.bf16.msra.mxu0 %v1572
    %1626 = vmatprep.subr.bf16.mxu0 0
    %1627 = vmatpush1.bf16.msra.mxu0 %v1573
    %1628 = vmatprep.subr.bf16.mxu0 0
    %1629 = vmatpush1.bf16.msra.mxu0 %v1574
    %1630 = vmatprep.subr.bf16.mxu0 0
    %1631 = vmatpush1.bf16.msra.mxu0 %v1575
    %1632 = vmatprep.subr.bf16.mxu0 0
    %1633 = vmatpush1.bf16.msra.mxu0 %v1576
    %1634 = vmatprep.subr.bf16.mxu0 0
    %1635 = vmatpush1.bf16.msra.mxu0 %v1577
    %1636 = vmatprep.subr.bf16.mxu0 0
    %1637 = vmatpush1.bf16.msra.mxu0 %v1578
    %1638 = vmatprep.subr.bf16.mxu0 0
    %1639 = vmatpush1.bf16.msra.mxu0 %v1579
    %1640 = vmatprep.subr.bf16.mxu0 0
    %1641 = vmatpush1.bf16.msra.mxu0 %v1580
    %1642 = vmatprep.subr.bf16.mxu0 0
    %1643 = vmatpush1.bf16.msra.mxu0 %v1581
    %1644 = vmatprep.subr.bf16.mxu0 0
    %1645 = vmatpush1.bf16.msra.mxu0 %v1582
    %1646 = vmatprep.subr.bf16.mxu0 0
    %1647 = vmatpush1.bf16.msra.mxu0 %v1583
    %1648 = vmatprep.mubr.bf16.mxu0 %v1422
    %1649 = vmatmul.mubr.bf16.gmra.mrb[0].mxu0 %v1421
    %v1650 = vpop.f32.mrb[0].mxu0
    %v1651 = vadd.f32 0.0, %v1650
    %v1652 = vpop.f32.mrb[0].mxu0
    %v1653 = vpop.f32.mrb[0].mxu0
    %v1654 = vadd.f32 0.0, %v1653
    %v1655 = vpop.f32.mrb[0].mxu0
    %1656 = vdwg.mxu0
    %1657 = vmatprep.subr.bf16.mxu0 0
    %1658 = vmatpush1.bf16.msra.mxu0 %v1584
    %1659 = vmatprep.subr.bf16.mxu0 0
    %1660 = vmatpush1.bf16.msra.mxu0 %v1585
    %1661 = vmatprep.subr.bf16.mxu0 0
    %1662 = vmatpush1.bf16.msra.mxu0 %v1586
    %1663 = vmatprep.subr.bf16.mxu0 0
    %1664 = vmatpush1.bf16.msra.mxu0 %v1587
    %1665 = vmatprep.subr.bf16.mxu0 0
    %1666 = vmatpush1.bf16.msra.mxu0 %v1588
    %1667 = vmatprep.subr.bf16.mxu0 0
    %1668 = vmatpush1.bf16.msra.mxu0 %v1589
    %1669 = vmatprep.subr.bf16.mxu0 0
    %1670 = vmatpush1.bf16.msra.mxu0 %v1590
    %1671 = vmatprep.subr.bf16.mxu0 0
    %1672 = vmatpush1.bf16.msra.mxu0 %v1591
    %1673 = vmatprep.subr.bf16.mxu0 0
    %1674 = vmatpush1.bf16.msra.mxu0 0
    %1675 = vmatprep.subr.bf16.mxu0 0
    %1676 = vmatpush1.bf16.msra.mxu0 0
    %1677 = vmatprep.subr.bf16.mxu0 0
    %1678 = vmatpush1.bf16.msra.mxu0 0
    %1679 = vmatprep.subr.bf16.mxu0 0
    %1680 = vmatpush1.bf16.msra.mxu0 0
    %1681 = vmatprep.subr.bf16.mxu0 0
    %1682 = vmatpush1.bf16.msra.mxu0 0
    %1683 = vmatprep.subr.bf16.mxu0 0
    %1684 = vmatpush1.bf16.msra.mxu0 0
    %1685 = vmatprep.subr.bf16.mxu0 0
    %1686 = vmatpush1.bf16.msra.mxu0 0
    %1687 = vmatprep.subr.bf16.mxu0 0
    %1688 = vmatpush1.bf16.msra.mxu0 0
    %1689 = vmatprep.mubr.bf16.mxu0 0
    %1690 = vmatmul.mubr.bf16.gmra.mrb[0].mxu0 %v1423
    %v1691 = vpop.f32.mrb[0].mxu0
    %v1692 = vadd.f32 %v1651, %v1691
    %v1693 = vpop.f32.mrb[0].mxu0
    %v1694 = vpop.f32.mrb[0].mxu0
    %v1695 = vadd.f32 %v1654, %v1694
    %v1696 = vpop.f32.mrb[0].mxu0
    %1697 = vdwg.mxu0
    %v1698 = vmax.f32 %v1692, 0.0
    %v1699 = vmax.f32 %v1695, 0.0
    %v1700 = vpack.c.bf16 %v1699, %v1698
    %v1701 = vld [vmem:[#allocation8] sm:$0xf]
    %v1702 = vld [vmem:[#allocation8 + $0x4] sm:$0xf]
    %v1703 = vld [vmem:[#allocation8 + $0x8] sm:$0xf]
    %v1704 = vld [vmem:[#allocation8 + $0xc] sm:$0xf]
    %v1705 = vld [vmem:[#allocation8 + $0x10] sm:$0xf]
    %v1706 = vld [vmem:[#allocation8 + $0x14] sm:$0xf]
    %v1707 = vld [vmem:[#allocation8 + $0x18] sm:$0xf]
    %v1708 = vld [vmem:[#allocation8 + $0x1c] sm:$0xf]
    %v1709 = vld [vmem:[#allocation8 + $0x20] sm:$0xf]
    %v1710 = vld [vmem:[#allocation8 + $0x24] sm:$0xf]
    %v1711 = vld [vmem:[#allocation8 + $0x28] sm:$0xf]
    %v1712 = vld [vmem:[#allocation8 + $0x2c] sm:$0xf]
    %v1713 = vld [vmem:[#allocation8 + $0x30] sm:$0xf]
    %v1714 = vld [vmem:[#allocation8 + $0x34] sm:$0xf]
    %v1715 = vld [vmem:[#allocation8 + $0x38] sm:$0xf]
    %v1716 = vld [vmem:[#allocation8 + $0x3c] sm:$0xf]
    %v1733 = vunpack.c.l.b16 %v1701
    %v1734 = vunpack.c.l.b16 %v1702
    %v1735 = vunpack.c.l.b16 %v1703
    %v1736 = vunpack.c.l.b16 %v1704
    %v1737 = vunpack.c.l.b16 %v1705
    %v1738 = vunpack.c.l.b16 %v1706
    %v1739 = vunpack.c.l.b16 %v1707
    %v1740 = vunpack.c.l.b16 %v1708
    %v1741 = vunpack.c.l.b16 %v1709
    %v1742 = vunpack.c.l.b16 %v1710
    %v1743 = vunpack.c.l.b16 %v1711
    %v1744 = vunpack.c.l.b16 %v1712
    %v1745 = vunpack.c.l.b16 %v1713
    %v1746 = vunpack.c.l.b16 %v1714
    %v1747 = vunpack.c.l.b16 %v1715
    %v1748 = vunpack.c.l.b16 %v1716
    %v1749 = vpack.c.b16 %v1734, %v1733
    %v1750 = vpack.c.b16 %v1736, %v1735
    %v1751 = vpack.c.b16 %v1738, %v1737
    %v1752 = vpack.c.b16 %v1740, %v1739
    %v1753 = vpack.c.b16 %v1742, %v1741
    %v1754 = vpack.c.b16 %v1744, %v1743
    %v1755 = vpack.c.b16 %v1746, %v1745
    %v1756 = vpack.c.b16 %v1748, %v1747
    %1765 = vmatprep.subr.bf16.mxu0 0
    %1766 = vmatpush1.bf16.msra.mxu0 %v1749
    %1767 = vmatprep.subr.bf16.mxu0 0
    %1768 = vmatpush1.bf16.msra.mxu0 %v1750
    %1769 = vmatprep.subr.bf16.mxu0 0
    %1770 = vmatpush1.bf16.msra.mxu0 %v1751
    %1771 = vmatprep.subr.bf16.mxu0 0
    %1772 = vmatpush1.bf16.msra.mxu0 %v1752
    %1773 = vmatprep.subr.bf16.mxu0 0
    %1774 = vmatpush1.bf16.msra.mxu0 %v1753
    %1775 = vmatprep.subr.bf16.mxu0 0
    %1776 = vmatpush1.bf16.msra.mxu0 %v1754
    %1777 = vmatprep.subr.bf16.mxu0 0
    %1778 = vmatpush1.bf16.msra.mxu0 %v1755
    %1779 = vmatprep.subr.bf16.mxu0 0
    %1780 = vmatpush1.bf16.msra.mxu0 %v1756
    %1781 = vmatprep.subr.bf16.mxu0 0
    %1782 = vmatpush1.bf16.msra.mxu0 0
    %1783 = vmatprep.subr.bf16.mxu0 0
    %1784 = vmatpush1.bf16.msra.mxu0 0
    %1785 = vmatprep.subr.bf16.mxu0 0
    %1786 = vmatpush1.bf16.msra.mxu0 0
    %1787 = vmatprep.subr.bf16.mxu0 0
    %1788 = vmatpush1.bf16.msra.mxu0 0
    %1789 = vmatprep.subr.bf16.mxu0 0
    %1790 = vmatpush1.bf16.msra.mxu0 0
    %1791 = vmatprep.subr.bf16.mxu0 0
    %1792 = vmatpush1.bf16.msra.mxu0 0
    %1793 = vmatprep.subr.bf16.mxu0 0
    %1794 = vmatpush1.bf16.msra.mxu0 0
    %1795 = vmatprep.subr.bf16.mxu0 0
    %1796 = vmatpush1.bf16.msra.mxu0 0
    %1797 = vmatprep.mubr.bf16.mxu0 0
    %1798 = vmatmul.mubr.bf16.gmra.mrb[0].mxu0 %v1700
    %v1799 = vpop.f32.mrb[0].mxu0
    %v1800 = vadd.f32 0.0, %v1799
    %v1801 = vpop.f32.mrb[0].mxu0
    %v1802 = vpop.f32.mrb[0].mxu0
    %v1803 = vadd.f32 0.0, %v1802
    %v1804 = vpop.f32.mrb[0].mxu0
    %1805 = vdwg.mxu0
    %v1806 = vpack.c.bf16 %v1803, %v1800
    %v1808 = vunpack.c.l.b16 %v1806
    %v1809 = vunpack.c.h.b16 %v1806
    %v1810 = vpack.c.b16 %v1808, %v1808
    %v1811 = vpack.c.b16 %v1809, %v1809
    %1814 = vst [vmem:[#allocation10] sm:$0xf] %v1810
    %1815 = vst [vmem:[#allocation10 + $0x4] sm:$0xf] %v1811
    // Predicated region
    $region34: #{tpu_custom_call.1} parent=1 // pred_check
      _
    $region35: #{tpu_custom_call.1} parent=1 // pred_check_branch
      %1817 = sbr.rel (0) target = $region37
    $region36: #{tpu_custom_call.1} parent=1 // pred_region
      %s1819 = ssub.s32 128, 128
      %1820 = vsyncadd [#allocation4], %s1819
      %s1821 = sshll.u32 [#allocation10], 4
      %s1822 = int_to_ptr.vmem [resolvable:$true] %s1821
      %1827 = dma.vmem_to_hbm [thread:$0]  %s1822, 128, %s4, [#allocation4], 64, 64, 4
    $region37: #{tpu_custom_call.1} parent=1 // pred_fallthru
      _
    // Predicated region
    $region38: #{tpu_custom_call.1} parent=1 // pred_check
      _
    $region39: #{tpu_custom_call.1} parent=1 // pred_check_branch
      %1829 = sbr.rel (0) target = $region41
    $region40: #{tpu_custom_call.1} parent=1 // pred_region
      %1830 = dma.done [#allocation4], 128
    $region41: #{tpu_custom_call.1} parent=1 // pred_fallthru
      _
    %1831 = vsyncpa [#allocation3], 1
    %1832 = vsyncpa [#allocation6], 1
    %1833 = vsyncpa [#allocation9], 1
    %1834 = vsyncpa [#allocation4], 1

</llo_original>
